<compile_context>
chip_gen: v7x
topology: tpu7x:2x2x1
jax: 0.10.0
libtpu: 0.0.40
codegen_flags: <defaults>
</compile_context>

<pallas_src>
import functools

import jax
import jax.numpy as jnp
from jax.experimental import pallas as pl
from jax.experimental.pallas import tpu as pltpu

D_MODEL = 32
NUM_HEADS = 4
D_FF = 64
HEAD_DIM = D_MODEL // NUM_HEADS
EPS = 1e-6
VEC_W = max(3 * D_MODEL, D_FF)          # width of the packed small-vector slab


def _normalize(x):
    """LayerNorm without affine (gamma/beta are folded into the next matmul)."""
    mean = jnp.mean(x, axis=-1, keepdims=True)
    c = x - mean
    var = jnp.mean(c * c, axis=-1, keepdims=True)
    return c * jax.lax.rsqrt(var + EPS)


def encoder_layer_kernel(x_ref, wqkv_ref, wo_ref, w1_ref, w2_ref, vec_ref,
                         o_ref, *, seq_len, compute_dtype):
    # x_ref block: (1, R, D) with R = BB * S rows belonging to this chunk.
    _, R, D = x_ref.shape
    S = seq_len
    BB = R // S
    H, HD = NUM_HEADS, HEAD_DIM

    x = x_ref[0]                                   # (R, D) f32

    vecs = vec_ref[...]                            # (4, VEC_W) packed vectors
    bqkv = vecs[0:1, :3 * D]                       # LN1 affine + q-scale folded
    bo = vecs[1:2, :D]
    fb1 = vecs[2:3, :D_FF]                         # LN2 affine folded
    fb2 = vecs[3:4, :D]

    def mm(a, w_ref):
        return jnp.dot(a.astype(compute_dtype), w_ref[...],
                       preferred_element_type=jnp.float32)

    # ---- pre-norm 1 + fused QKV projection (one wide MXU push) -------------
    h = _normalize(x)
    qkv = mm(h, wqkv_ref) + bqkv                   # (R, 3D)

    q3 = qkv[:, 0 * D:1 * D].reshape(BB, S, D)     # leading-dim split: free
    k3 = qkv[:, 1 * D:2 * D].reshape(BB, S, D)
    v3 = qkv[:, 2 * D:3 * D].reshape(BB, S, D)

    # ---- single batched multi-head attention --------------------------------
    # Head-major (H*BB, S, HD) built from H contiguous lane slices (batched
    # over all rows) + one leading-axis concat; no per-(batch, head) loop.
    def heads(t):
        return jnp.concatenate(
            [t[:, :, hh * HD:(hh + 1) * HD] for hh in range(H)], axis=0)

    qh = heads(q3).astype(compute_dtype)
    kh = heads(k3).astype(compute_dtype)
    vh = heads(v3).astype(compute_dtype)

    s = jnp.einsum("bqd,bkd->bqk", qh, kh, preferred_element_type=jnp.float32)
    s = s - jnp.max(s, axis=-1, keepdims=True)
    p = jnp.exp(s)
    p = p * pl.reciprocal(jnp.sum(p, axis=-1, keepdims=True), approx=True)
    a = jnp.einsum("bqk,bkd->bqd", p.astype(compute_dtype), vh,
                   preferred_element_type=jnp.float32)   # (H*BB, S, HD)

    # Merge heads back: H leading slices + one lane concat + free reshape.
    attn = jnp.concatenate([a[hh * BB:(hh + 1) * BB] for hh in range(H)],
                           axis=-1).reshape(R, D)
    x1 = x + mm(attn, wo_ref) + bo

    # ---- pre-norm 2 + feed-forward ------------------------------------------
    h2 = _normalize(x1)
    f = jnp.maximum(mm(h2, w1_ref) + fb1, 0.0)
    out = x1 + mm(f, w2_ref) + fb2                 # (R, D)

    o_ref[0] = out                                 # natural-layout store


def _pack_params(p):
    """Fuse QKV weights, fold LN affines + q-scale, pack small vectors."""
    D = D_MODEL
    g1 = jnp.asarray(p["g1"], jnp.float32).reshape(-1)
    b1 = jnp.asarray(p["b1"], jnp.float32).reshape(-1)
    g2 = jnp.asarray(p["g2"], jnp.float32).reshape(-1)
    b2 = jnp.asarray(p["b2"], jnp.float32).reshape(-1)

    wqkv = jnp.concatenate([p["wq"], p["wk"], p["wv"]], axis=1)        # (D, 3D)
    bqkv = jnp.concatenate([p["bq"].reshape(-1), p["bk"].reshape(-1),
                            p["bv"].reshape(-1)])                      # (3D,)

    # Fold LayerNorm affine into the following matmul (exact: LN outputs feed
    # only the matmuls, residuals use the raw activations):
    #   (norm(x)*g + b) @ W + c == norm(x) @ (diag(g) @ W) + (b @ W + c)
    wqkv_f = g1[:, None] * wqkv
    bqkv_f = b1 @ wqkv + bqkv
    w1_f = g2[:, None] * jnp.asarray(p["w1"], jnp.float32)
    fb1_f = b2 @ p["w1"] + p["fb1"].reshape(-1)

    # Fold the 1/sqrt(head_dim) attention scale into the Q columns.
    scale = jnp.float32(HEAD_DIM ** -0.5)
    wqkv_f = wqkv_f.at[:, :D].multiply(scale)
    bqkv_f = bqkv_f.at[:D].multiply(scale)

    def row(v):
        v = jnp.asarray(v, jnp.float32).reshape(1, -1)
        return jnp.pad(v, ((0, 0), (0, VEC_W - v.shape[1])))

    vecs = jnp.concatenate(
        [row(bqkv_f), row(p["bo"]), row(fb1_f), row(p["fb2"])], axis=0)  # (4, VEC_W)
    return (wqkv_f, jnp.asarray(p["wo"], jnp.float32), w1_f,
            jnp.asarray(p["w2"], jnp.float32), vecs)


def _tensorcores_per_chip():
    try:
        kind = jax.devices()[0].device_kind.lower()
    except Exception:
        return 1
    # v7x exposes 2 TensorCores per chip; v5e / v6e have 1.
    if "v7" in kind or "tpu7" in kind:
        return 2
    return 1


def _pick_batch_chunks(B, S):
    rows = B * S
    row_bytes = D_MODEL * 4
    n_tc = _tensorcores_per_chip()
    if n_tc >= 2 and B % 2 == 0 and (rows // 2) >= 512:
        # v7x: feed both TensorCores once each chunk carries a few us of work;
        # grow chunk count only to keep per-chunk x blocks ~<=2 MiB (well under
        # the 64-MiB physical / 32-MiB scoped VMEM).
        chunks = 2
        while B % (2 * chunks) == 0 and (rows // chunks) * row_bytes > (2 << 20):
            chunks *= 2
        return chunks
    # Single-TC v5e/v6e: extra grid steps cost ~0.35 us with zero parallelism,
    # so stay at 1 chunk until the per-chunk x DMA is MiB-sized; then >=3
    # chunks re-enable BlockSpec double-buffering (DMA/compute overlap).
    if rows * row_bytes >= 3 * (1 << 20):
        for c in range(3, B + 1):
            if B % c == 0 and (rows // c) * row_bytes <= (2 << 20):
                return c
    return 1


def encoder_layer(x, params, *, batch_chunks=None, compute_dtype=jnp.float32):
    """x: (B, S, D) float32.  params: dict of weights (see init_params)."""
    B, S, D = x.shape
    assert D == D_MODEL
    if batch_chunks is None:
        batch_chunks = _pick_batch_chunks(B, S)
    assert B % batch_chunks == 0
    BB = B // batch_chunks
    R = BB * S

    wqkv, wo, w1, w2, vecs = _pack_params(params)
    # Optional bf16 matmul operands for v6e/v7x (accumulation stays f32).
    wqkv, wo, w1, w2 = (w.astype(compute_dtype) for w in (wqkv, wo, w1, w2))
    weight_args = (wqkv, wo, w1, w2, vecs)

    xr = x.reshape(batch_chunks, R, D)      # free layout change outside kernel

    kernel = functools.partial(encoder_layer_kernel, seq_len=S,
                               compute_dtype=compute_dtype)

    weight_bytes = sum(int(w.size) * w.dtype.itemsize for w in weight_args)
    flops = (2 * B * S * D * (3 * D + D + 2 * D_FF)
             + 4 * B * NUM_HEADS * S * S * HEAD_DIM)
    cost = pl.CostEstimate(
        flops=int(flops),
        transcendentals=int(B * NUM_HEADS * S * S),
        bytes_accessed=int(2 * B * S * D * 4 + weight_bytes))

    # Scoped-VMEM estimate: double-buffered x in/out + resident weights.
    x_block_bytes = R * D * 4
    vmem_needed = 4 * x_block_bytes + 2 * weight_bytes + (1 << 20)
    ckw = dict(dimension_semantics=("parallel",))
    if vmem_needed > (16 << 20):            # v5e default scoped limit
        ckw["vmem_limit_bytes"] = int(min(vmem_needed, 48 << 20))

    out = pl.pallas_call(
        kernel,
        out_shape=jax.ShapeDtypeStruct((batch_chunks, R, D), jnp.float32),
        grid=(batch_chunks,),
        in_specs=[pl.BlockSpec((1, R, D), lambda c: (c, 0, 0))]
                + [pl.BlockSpec(w.shape, lambda c: (0, 0)) for w in weight_args],
        out_specs=pl.BlockSpec((1, R, D), lambda c: (c, 0, 0)),
        compiler_params=pltpu.CompilerParams(**ckw),
        cost_estimate=cost,
    )(xr, *weight_args)

    return out.reshape(B, S, D)


def init_params(key):
    ks = jax.random.split(key, 16)
    std = 0.02

    def nrm(k, shape, s):
        return s * jax.random.normal(k, shape, jnp.float32)

    # Non-trivial LN affines / biases so the wrapper-side folding is exercised.
    return {
        "g1": 1.0 + nrm(ks[0], (1, D_MODEL), 0.1),
        "b1": nrm(ks[1], (1, D_MODEL), 0.1),
        "g2": 1.0 + nrm(ks[2], (1, D_MODEL), 0.1),
        "b2": nrm(ks[3], (1, D_MODEL), 0.1),
        "wq": nrm(ks[4], (D_MODEL, D_MODEL), std),
        "bq": nrm(ks[5], (1, D_MODEL), 0.02),
        "wk": nrm(ks[6], (D_MODEL, D_MODEL), std),
        "bk": nrm(ks[7], (1, D_MODEL), 0.02),
        "wv": nrm(ks[8], (D_MODEL, D_MODEL), std),
        "bv": nrm(ks[9], (1, D_MODEL), 0.02),
        "wo": nrm(ks[10], (D_MODEL, D_MODEL), std),
        "bo": nrm(ks[11], (1, D_MODEL), 0.02),
        "w1": nrm(ks[12], (D_MODEL, D_FF), std),
        "fb1": nrm(ks[13], (1, D_FF), 0.02),
        "w2": nrm(ks[14], (D_FF, D_MODEL), std),
        "fb2": nrm(ks[15], (1, D_MODEL), 0.02),
    }


def encoder_layer_ref(x, p):
    """Pure-JAX reference mirroring the PyTorch forward (eval / no mask)."""
    def ln(v, g, b):
        m = jnp.mean(v, -1, keepdims=True)
        var = jnp.mean((v - m) ** 2, -1, keepdims=True)
        return (v - m) / jnp.sqrt(var + EPS) * g + b

    B, S, D = x.shape
    h = ln(x, p["g1"], p["b1"])
    q = h @ p["wq"] + p["bq"]
    k = h @ p["wk"] + p["bk"]
    v = h @ p["wv"] + p["bv"]
    q = q.reshape(B, S, NUM_HEADS, HEAD_DIM).transpose(0, 2, 1, 3)
    k = k.reshape(B, S, NUM_HEADS, HEAD_DIM).transpose(0, 2, 1, 3)
    v = v.reshape(B, S, NUM_HEADS, HEAD_DIM).transpose(0, 2, 1, 3)
    s = jnp.einsum("bhqd,bhkd->bhqk", q, k) / jnp.sqrt(jnp.float32(HEAD_DIM))
    pattn = jax.nn.softmax(s, axis=-1)
    a = jnp.einsum("bhqk,bhkd->bhqd", pattn, v)
    a = a.transpose(0, 2, 1, 3).reshape(B, S, D)
    a = a @ p["wo"] + p["bo"]
    x = x + a
    h2 = ln(x, p["g2"], p["b2"])
    f = jnp.maximum(h2 @ p["w1"] + p["fb1"], 0.0) @ p["w2"] + p["fb2"]
    return x + f


if __name__ == "__main__":
    key = jax.random.PRNGKey(0)
    k_x, k_p = jax.random.split(key)

    B, S = 2, 8
    x = jax.random.normal(k_x, (B, S, D_MODEL), jnp.float32)
    params = init_params(k_p)

    out = jax.block_until_ready(encoder_layer(x, params))
    ref = encoder_layer_ref(x, params)

    assert out.shape == ref.shape == (B, S, D_MODEL)
    # Tolerance covers the EUP approx-reciprocal in the softmax denominator
    # (~1e-3 relative worst case); everything else is exact f32.
    assert jnp.allclose(out, ref, atol=1e-3, rtol=1e-3), (
        float(jnp.max(jnp.abs(out - ref))))
    print("KERNEL_OK")
</pallas_src>

<mosaic_0001>
module attributes {stable_mosaic.version = 11 : i64} {
  func.func @encoder_layer_kernel(%arg0: i32, %arg1: memref<1x16x32xf32, #tpu.memory_space<vmem>>, %arg2: memref<32x96xf32, #tpu.memory_space<vmem>>, %arg3: memref<32x32xf32, #tpu.memory_space<vmem>>, %arg4: memref<32x64xf32, #tpu.memory_space<vmem>>, %arg5: memref<64x32xf32, #tpu.memory_space<vmem>>, %arg6: memref<4x96xf32, #tpu.memory_space<vmem>>, %arg7: memref<1x16x32xf32, #tpu.memory_space<vmem>>) attributes {dimension_semantics = [#tpu.dimension_semantics<parallel>], iteration_bounds = array<i64: 1>, scalar_prefetch = 0 : i64, scratch_operands = 0 : i64, tpu.core_type = #tpu.core_type<tc>, window_params = [{transform_indices = @transform_0, window_bounds = array<i64: 1, 16, 32>}, {pipeline_mode = #tpu.pipeline_mode<synchronous>, transform_indices = @transform_1, window_bounds = array<i64: 32, 96>}, {pipeline_mode = #tpu.pipeline_mode<synchronous>, transform_indices = @transform_2, window_bounds = array<i64: 32, 32>}, {pipeline_mode = #tpu.pipeline_mode<synchronous>, transform_indices = @transform_3, window_bounds = array<i64: 32, 64>}, {pipeline_mode = #tpu.pipeline_mode<synchronous>, transform_indices = @transform_4, window_bounds = array<i64: 64, 32>}, {pipeline_mode = #tpu.pipeline_mode<synchronous>, transform_indices = @transform_5, window_bounds = array<i64: 4, 96>}, {transform_indices = @transform_6, window_bounds = array<i64: 1, 16, 32>}]} {
    %c0 = arith.constant 0 : index
    %c0_0 = arith.constant 0 : index
    %c0_1 = arith.constant 0 : index
    %0 = vector.load %arg1[%c0, %c0_0, %c0_1] : memref<1x16x32xf32, #tpu.memory_space<vmem>>, vector<1x16x32xf32>
    %1 = vector.shape_cast %0 : vector<1x16x32xf32> to vector<16x32xf32>
    %c0_2 = arith.constant 0 : index
    %c0_3 = arith.constant 0 : index
    %2 = vector.load %arg6[%c0_2, %c0_3] : memref<4x96xf32, #tpu.memory_space<vmem>>, vector<4x96xf32>
    %3 = vector.extract_strided_slice %2 {offsets = [0, 0], sizes = [1, 96], strides = [1, 1]} : vector<4x96xf32> to vector<1x96xf32>
    %4 = vector.extract_strided_slice %2 {offsets = [1, 0], sizes = [1, 32], strides = [1, 1]} : vector<4x96xf32> to vector<1x32xf32>
    %5 = vector.extract_strided_slice %2 {offsets = [2, 0], sizes = [1, 64], strides = [1, 1]} : vector<4x96xf32> to vector<1x64xf32>
    %6 = vector.extract_strided_slice %2 {offsets = [3, 0], sizes = [1, 32], strides = [1, 1]} : vector<4x96xf32> to vector<1x32xf32>
    %cst = arith.constant dense<0.000000e+00> : vector<16xf32>
    %7 = vector.multi_reduction <add>, %1, %cst [1] : vector<16x32xf32> to vector<16xf32>
    %8 = vector.shape_cast %7 : vector<16xf32> to vector<16x1xf32>
    %cst_4 = arith.constant 3.200000e+01 : f32
    %9 = vector.broadcast %cst_4 : f32 to vector<16x1xf32>
    %10 = arith.divf %8, %9 : vector<16x1xf32>
    %11 = vector.broadcast %10 : vector<16x1xf32> to vector<16x32xf32>
    %12 = arith.subf %1, %11 : vector<16x32xf32>
    %13 = arith.mulf %12, %12 : vector<16x32xf32>
    %cst_5 = arith.constant dense<0.000000e+00> : vector<16xf32>
    %14 = vector.multi_reduction <add>, %13, %cst_5 [1] : vector<16x32xf32> to vector<16xf32>
    %15 = vector.shape_cast %14 : vector<16xf32> to vector<16x1xf32>
    %cst_6 = arith.constant 3.200000e+01 : f32
    %16 = vector.broadcast %cst_6 : f32 to vector<16x1xf32>
    %17 = arith.divf %15, %16 : vector<16x1xf32>
    %cst_7 = arith.constant 9.99999997E-7 : f32
    %18 = vector.broadcast %cst_7 : f32 to vector<16x1xf32>
    %19 = arith.addf %17, %18 : vector<16x1xf32>
    %20 = math.rsqrt %19 : vector<16x1xf32>
    %21 = vector.broadcast %20 : vector<16x1xf32> to vector<16x32xf32>
    %22 = arith.mulf %12, %21 : vector<16x32xf32>
    %c0_8 = arith.constant 0 : index
    %c0_9 = arith.constant 0 : index
    %23 = vector.load %arg2[%c0_8, %c0_9] : memref<32x96xf32, #tpu.memory_space<vmem>>, vector<32x96xf32>
    %cst_10 = arith.constant dense<0.000000e+00> : vector<16x96xf32>
    %24 = tpu.matmul %22, %23, %cst_10 {dimension_numbers = #tpu.dot_dimension_numbers<[1], [0], [0], [1], [0, 0, 1, 1], [], []>} : vector<16x32xf32>, vector<32x96xf32>, vector<16x96xf32> -> vector<16x96xf32>
    %25 = vector.broadcast %3 : vector<1x96xf32> to vector<16x96xf32>
    %26 = arith.addf %24, %25 : vector<16x96xf32>
    %27 = vector.extract_strided_slice %26 {offsets = [0, 0], sizes = [16, 32], strides = [1, 1]} : vector<16x96xf32> to vector<16x32xf32>
    %28 = vector.shape_cast %27 : vector<16x32xf32> to vector<2x8x32xf32>
    %29 = vector.extract_strided_slice %26 {offsets = [0, 32], sizes = [16, 32], strides = [1, 1]} : vector<16x96xf32> to vector<16x32xf32>
    %30 = vector.shape_cast %29 : vector<16x32xf32> to vector<2x8x32xf32>
    %31 = vector.extract_strided_slice %26 {offsets = [0, 64], sizes = [16, 32], strides = [1, 1]} : vector<16x96xf32> to vector<16x32xf32>
    %32 = vector.shape_cast %31 : vector<16x32xf32> to vector<2x8x32xf32>
    %33 = vector.extract_strided_slice %28 {offsets = [0, 0, 0], sizes = [2, 8, 8], strides = [1, 1, 1]} : vector<2x8x32xf32> to vector<2x8x8xf32>
    %34 = vector.extract_strided_slice %28 {offsets = [0, 0, 8], sizes = [2, 8, 8], strides = [1, 1, 1]} : vector<2x8x32xf32> to vector<2x8x8xf32>
    %35 = vector.extract_strided_slice %28 {offsets = [0, 0, 16], sizes = [2, 8, 8], strides = [1, 1, 1]} : vector<2x8x32xf32> to vector<2x8x8xf32>
    %36 = vector.extract_strided_slice %28 {offsets = [0, 0, 24], sizes = [2, 8, 8], strides = [1, 1, 1]} : vector<2x8x32xf32> to vector<2x8x8xf32>
    %37 = tpu.concatenate %33, %34, %35, %36 in 0 : vector<2x8x8xf32>, vector<2x8x8xf32>, vector<2x8x8xf32>, vector<2x8x8xf32> -> vector<8x8x8xf32>
    %38 = vector.extract_strided_slice %30 {offsets = [0, 0, 0], sizes = [2, 8, 8], strides = [1, 1, 1]} : vector<2x8x32xf32> to vector<2x8x8xf32>
    %39 = vector.extract_strided_slice %30 {offsets = [0, 0, 8], sizes = [2, 8, 8], strides = [1, 1, 1]} : vector<2x8x32xf32> to vector<2x8x8xf32>
    %40 = vector.extract_strided_slice %30 {offsets = [0, 0, 16], sizes = [2, 8, 8], strides = [1, 1, 1]} : vector<2x8x32xf32> to vector<2x8x8xf32>
    %41 = vector.extract_strided_slice %30 {offsets = [0, 0, 24], sizes = [2, 8, 8], strides = [1, 1, 1]} : vector<2x8x32xf32> to vector<2x8x8xf32>
    %42 = tpu.concatenate %38, %39, %40, %41 in 0 : vector<2x8x8xf32>, vector<2x8x8xf32>, vector<2x8x8xf32>, vector<2x8x8xf32> -> vector<8x8x8xf32>
    %43 = vector.extract_strided_slice %32 {offsets = [0, 0, 0], sizes = [2, 8, 8], strides = [1, 1, 1]} : vector<2x8x32xf32> to vector<2x8x8xf32>
    %44 = vector.extract_strided_slice %32 {offsets = [0, 0, 8], sizes = [2, 8, 8], strides = [1, 1, 1]} : vector<2x8x32xf32> to vector<2x8x8xf32>
    %45 = vector.extract_strided_slice %32 {offsets = [0, 0, 16], sizes = [2, 8, 8], strides = [1, 1, 1]} : vector<2x8x32xf32> to vector<2x8x8xf32>
    %46 = vector.extract_strided_slice %32 {offsets = [0, 0, 24], sizes = [2, 8, 8], strides = [1, 1, 1]} : vector<2x8x32xf32> to vector<2x8x8xf32>
    %47 = tpu.concatenate %43, %44, %45, %46 in 0 : vector<2x8x8xf32>, vector<2x8x8xf32>, vector<2x8x8xf32>, vector<2x8x8xf32> -> vector<8x8x8xf32>
    "tpu.trace_start"() <{level = 10 : i32, message = "bqd,bkd->bqk"}> : () -> ()
    %cst_11 = arith.constant dense<0.000000e+00> : vector<8x8x8xf32>
    %48 = tpu.matmul %37, %42, %cst_11 {dimension_numbers = #tpu.dot_dimension_numbers<[2], [2], [1], [1], [0, 0, 0, 1, 1, 1], [0], [0]>} : vector<8x8x8xf32>, vector<8x8x8xf32>, vector<8x8x8xf32> -> vector<8x8x8xf32>
    "tpu.trace_stop"() : () -> ()
    %cst_12 = arith.constant dense<0xFF800000> : vector<8x8xf32>
    %49 = vector.multi_reduction <maximumf>, %48, %cst_12 [2] : vector<8x8x8xf32> to vector<8x8xf32>
    %50 = vector.shape_cast %49 : vector<8x8xf32> to vector<8x8x1xf32>
    %51 = vector.broadcast %50 : vector<8x8x1xf32> to vector<8x8x8xf32>
    %52 = arith.subf %48, %51 : vector<8x8x8xf32>
    %53 = math.exp %52 : vector<8x8x8xf32>
    %cst_13 = arith.constant dense<0.000000e+00> : vector<8x8xf32>
    %54 = vector.multi_reduction <add>, %53, %cst_13 [2] : vector<8x8x8xf32> to vector<8x8xf32>
    %55 = vector.shape_cast %54 : vector<8x8xf32> to vector<8x8x1xf32>
    %56 = tpu.reciprocal %55 {approx = true} : vector<8x8x1xf32> -> vector<8x8x1xf32>
    %57 = vector.broadcast %56 : vector<8x8x1xf32> to vector<8x8x8xf32>
    %58 = arith.mulf %53, %57 : vector<8x8x8xf32>
    "tpu.trace_start"() <{level = 10 : i32, message = "bqk,bkd->bqd"}> : () -> ()
    %cst_14 = arith.constant dense<0.000000e+00> : vector<8x8x8xf32>
    %59 = tpu.matmul %58, %47, %cst_14 {dimension_numbers = #tpu.dot_dimension_numbers<[2], [1], [1], [2], [0, 0, 0, 1, 1, 2], [0], [0]>} : vector<8x8x8xf32>, vector<8x8x8xf32>, vector<8x8x8xf32> -> vector<8x8x8xf32>
    "tpu.trace_stop"() : () -> ()
    %60 = vector.extract_strided_slice %59 {offsets = [0, 0, 0], sizes = [2, 8, 8], strides = [1, 1, 1]} : vector<8x8x8xf32> to vector<2x8x8xf32>
    %61 = vector.extract_strided_slice %59 {offsets = [2, 0, 0], sizes = [2, 8, 8], strides = [1, 1, 1]} : vector<8x8x8xf32> to vector<2x8x8xf32>
    %62 = vector.extract_strided_slice %59 {offsets = [4, 0, 0], sizes = [2, 8, 8], strides = [1, 1, 1]} : vector<8x8x8xf32> to vector<2x8x8xf32>
    %63 = vector.extract_strided_slice %59 {offsets = [6, 0, 0], sizes = [2, 8, 8], strides = [1, 1, 1]} : vector<8x8x8xf32> to vector<2x8x8xf32>
    %64 = tpu.concatenate %60, %61, %62, %63 in 2 : vector<2x8x8xf32>, vector<2x8x8xf32>, vector<2x8x8xf32>, vector<2x8x8xf32> -> vector<2x8x32xf32>
    %65 = vector.shape_cast %64 : vector<2x8x32xf32> to vector<16x32xf32>
    %c0_15 = arith.constant 0 : index
    %c0_16 = arith.constant 0 : index
    %66 = vector.load %arg3[%c0_15, %c0_16] : memref<32x32xf32, #tpu.memory_space<vmem>>, vector<32x32xf32>
    %cst_17 = arith.constant dense<0.000000e+00> : vector<16x32xf32>
    %67 = tpu.matmul %65, %66, %cst_17 {dimension_numbers = #tpu.dot_dimension_numbers<[1], [0], [0], [1], [0, 0, 1, 1], [], []>} : vector<16x32xf32>, vector<32x32xf32>, vector<16x32xf32> -> vector<16x32xf32>
    %68 = arith.addf %1, %67 : vector<16x32xf32>
    %69 = vector.broadcast %4 : vector<1x32xf32> to vector<16x32xf32>
    %70 = arith.addf %68, %69 : vector<16x32xf32>
    %cst_18 = arith.constant dense<0.000000e+00> : vector<16xf32>
    %71 = vector.multi_reduction <add>, %70, %cst_18 [1] : vector<16x32xf32> to vector<16xf32>
    %72 = vector.shape_cast %71 : vector<16xf32> to vector<16x1xf32>
    %cst_19 = arith.constant 3.200000e+01 : f32
    %73 = vector.broadcast %cst_19 : f32 to vector<16x1xf32>
    %74 = arith.divf %72, %73 : vector<16x1xf32>
    %75 = vector.broadcast %74 : vector<16x1xf32> to vector<16x32xf32>
    %76 = arith.subf %70, %75 : vector<16x32xf32>
    %77 = arith.mulf %76, %76 : vector<16x32xf32>
    %cst_20 = arith.constant dense<0.000000e+00> : vector<16xf32>
    %78 = vector.multi_reduction <add>, %77, %cst_20 [1] : vector<16x32xf32> to vector<16xf32>
    %79 = vector.shape_cast %78 : vector<16xf32> to vector<16x1xf32>
    %cst_21 = arith.constant 3.200000e+01 : f32
    %80 = vector.broadcast %cst_21 : f32 to vector<16x1xf32>
    %81 = arith.divf %79, %80 : vector<16x1xf32>
    %cst_22 = arith.constant 9.99999997E-7 : f32
    %82 = vector.broadcast %cst_22 : f32 to vector<16x1xf32>
    %83 = arith.addf %81, %82 : vector<16x1xf32>
    %84 = math.rsqrt %83 : vector<16x1xf32>
    %85 = vector.broadcast %84 : vector<16x1xf32> to vector<16x32xf32>
    %86 = arith.mulf %76, %85 : vector<16x32xf32>
    %c0_23 = arith.constant 0 : index
    %c0_24 = arith.constant 0 : index
    %87 = vector.load %arg4[%c0_23, %c0_24] : memref<32x64xf32, #tpu.memory_space<vmem>>, vector<32x64xf32>
    %cst_25 = arith.constant dense<0.000000e+00> : vector<16x64xf32>
    %88 = tpu.matmul %86, %87, %cst_25 {dimension_numbers = #tpu.dot_dimension_numbers<[1], [0], [0], [1], [0, 0, 1, 1], [], []>} : vector<16x32xf32>, vector<32x64xf32>, vector<16x64xf32> -> vector<16x64xf32>
    %89 = vector.broadcast %5 : vector<1x64xf32> to vector<16x64xf32>
    %90 = arith.addf %88, %89 : vector<16x64xf32>
    %cst_26 = arith.constant 0.000000e+00 : f32
    %91 = vector.broadcast %cst_26 : f32 to vector<16x64xf32>
    %92 = arith.maximumf %90, %91 : vector<16x64xf32>
    %c0_27 = arith.constant 0 : index
    %c0_28 = arith.constant 0 : index
    %93 = vector.load %arg5[%c0_27, %c0_28] : memref<64x32xf32, #tpu.memory_space<vmem>>, vector<64x32xf32>
    %cst_29 = arith.constant dense<0.000000e+00> : vector<16x32xf32>
    %94 = tpu.matmul %92, %93, %cst_29 {dimension_numbers = #tpu.dot_dimension_numbers<[1], [0], [0], [1], [0, 0, 1, 1], [], []>} : vector<16x64xf32>, vector<64x32xf32>, vector<16x32xf32> -> vector<16x32xf32>
    %95 = arith.addf %70, %94 : vector<16x32xf32>
    %96 = vector.broadcast %6 : vector<1x32xf32> to vector<16x32xf32>
    %97 = arith.addf %95, %96 : vector<16x32xf32>
    %c0_30 = arith.constant 0 : index
    %c0_31 = arith.constant 0 : index
    %c0_32 = arith.constant 0 : index
    %98 = vector.load %arg7[%c0_30, %c0_31, %c0_32] : memref<1x16x32xf32, #tpu.memory_space<vmem>>, vector<1x16x32xf32>
    %99 = vector.shape_cast %98 : vector<1x16x32xf32> to vector<16x32xf32>
    %100 = vector.shape_cast %97 : vector<16x32xf32> to vector<1x16x32xf32>
    tpu.vector_store %arg7[%c0_30, %c0_31, %c0_32], %100 {strides = array<i32>} : memref<1x16x32xf32, #tpu.memory_space<vmem>>, vector<1x16x32xf32>,
    return
  }
  func.func @transform_0(%arg0: i32) -> (i32, i32, i32) {
    %c0_i32 = arith.constant 0 : i32
    %c0_i32_0 = arith.constant 0 : i32
    %c0_i32_1 = arith.constant 0 : i32
    return %arg0, %c0_i32, %c0_i32_0 : i32, i32, i32
  }
  func.func @transform_1(%arg0: i32) -> (i32, i32) {
    %c0_i32 = arith.constant 0 : i32
    %c0_i32_0 = arith.constant 0 : i32
    %c0_i32_1 = arith.constant 0 : i32
    return %c0_i32, %c0_i32_0 : i32, i32
  }
  func.func @transform_2(%arg0: i32) -> (i32, i32) {
    %c0_i32 = arith.constant 0 : i32
    %c0_i32_0 = arith.constant 0 : i32
    %c0_i32_1 = arith.constant 0 : i32
    return %c0_i32, %c0_i32_0 : i32, i32
  }
  func.func @transform_3(%arg0: i32) -> (i32, i32) {
    %c0_i32 = arith.constant 0 : i32
    %c0_i32_0 = arith.constant 0 : i32
    %c0_i32_1 = arith.constant 0 : i32
    return %c0_i32, %c0_i32_0 : i32, i32
  }
  func.func @transform_4(%arg0: i32) -> (i32, i32) {
    %c0_i32 = arith.constant 0 : i32
    %c0_i32_0 = arith.constant 0 : i32
    %c0_i32_1 = arith.constant 0 : i32
    return %c0_i32, %c0_i32_0 : i32, i32
  }
  func.func @transform_5(%arg0: i32) -> (i32, i32) {
    %c0_i32 = arith.constant 0 : i32
    %c0_i32_0 = arith.constant 0 : i32
    %c0_i32_1 = arith.constant 0 : i32
    return %c0_i32, %c0_i32_0 : i32, i32
  }
  func.func @transform_6(%arg0: i32) -> (i32, i32, i32) {
    %c0_i32 = arith.constant 0 : i32
    %c0_i32_0 = arith.constant 0 : i32
    %c0_i32_1 = arith.constant 0 : i32
    return %arg0, %c0_i32, %c0_i32_0 : i32, i32, i32
  }
}

</mosaic_0001>

<llo_original>
// kernel: tpu_custom_call.1
$region0: #{tpu_custom_call.1}
  #allocation0 [shape = 'u32[]', space=smem, size = 0x4, offset = 0x4, fixed_abs, tag = 'smem constant byte address 0x4 - core index']
  #allocation1 [shape = 'u32[144,128]{1,0:T(1,128)}', space=vmem, size = 0x12000, scoped, tag = 'internal scratch']
  %s0 = inlined_call_operand.hbm [shape: f32[1,16,32], index: 0, kind: input, shape index: {}]
  %s1 = inlined_call_operand.vmem [shape: f32[32,96], index: 1, kind: input, shape index: {}]
  %s2 = inlined_call_operand.vmem [shape: f32[32,32], index: 2, kind: input, shape index: {}]
  %s3 = inlined_call_operand.vmem [shape: f32[32,64], index: 3, kind: input, shape index: {}]
  %s4 = inlined_call_operand.vmem [shape: f32[64,32], index: 4, kind: input, shape index: {}]
  %s5 = inlined_call_operand.vmem [shape: f32[4,96], index: 5, kind: input, shape index: {}]
  %s6 = inlined_call_operand.hbm [shape: f32[1,16,32], index: 6, kind: output, shape index: {}]
  %s7 = sld [smem:[#allocation0]]
  $region38: #{tpu_custom_call.1} parent=0
    _
  %s9 = ssub.s32 1, %s7
  %s10 = scalar_select 0, %s9, %s7
  $region1: #{tpu_custom_call.1} parent=0
    #allocation2 [shape = 'u8[8192]{0}', space=vmem, size = 0x2000, scoped, tag = 'input window, operand 0, single buffered']
    #allocation3 [shape = 's32[1]{0}', space=sflag, size = 0x4, scoped, tag = 'scoped memory for tpu_custom_call.1']
    #allocation4 [shape = 's32[1]{0}', space=sflag, size = 0x4, scoped, tag = 'scoped memory for tpu_custom_call.1']
    #allocation5 [shape = 'u8[8192]{0}', space=vmem, size = 0x2000, scoped, tag = 'output window, operand 0, single buffered']
    %11 = vsyncpa [#allocation3], 0
    %12 = vsyncpa [#allocation4], 0
    // Predicated region
    $region2: #{tpu_custom_call.1} parent=1 // pred_check
      _
    $region3: #{tpu_custom_call.1} parent=1 // pred_check_branch
      %14 = sbr.rel (0) target = $region5
    $region4: #{tpu_custom_call.1} parent=1 // pred_region
      %s16 = ssub.s32 256, 256
      %17 = vsyncadd [#allocation3], %s16
      %s18 = sshll.u32 [#allocation2], 4
      %s19 = int_to_ptr.vmem [resolvable:$true] %s18
      %24 = dma.hbm_to_vmem [thread:$0]  %s0, 256, %s19, [#allocation3], 128, 128, 8
    $region5: #{tpu_custom_call.1} parent=1 // pred_fallthru
      _
    // Predicated region
    $region6: #{tpu_custom_call.1} parent=1 // pred_check
      _
    $region7: #{tpu_custom_call.1} parent=1 // pred_check_branch
      %26 = sbr.rel (0) target = $region9
    $region8: #{tpu_custom_call.1} parent=1 // pred_region
      _
    $region9: #{tpu_custom_call.1} parent=1 // pred_fallthru
      _
    // Predicated region
    $region10: #{tpu_custom_call.1} parent=1 // pred_check
      _
    $region11: #{tpu_custom_call.1} parent=1 // pred_check_branch
      %28 = sbr.rel (0) target = $region13
    $region12: #{tpu_custom_call.1} parent=1 // pred_region
      _
    $region13: #{tpu_custom_call.1} parent=1 // pred_fallthru
      _
    // Predicated region
    $region14: #{tpu_custom_call.1} parent=1 // pred_check
      _
    $region15: #{tpu_custom_call.1} parent=1 // pred_check_branch
      %30 = sbr.rel (0) target = $region17
    $region16: #{tpu_custom_call.1} parent=1 // pred_region
      _
    $region17: #{tpu_custom_call.1} parent=1 // pred_fallthru
      _
    // Predicated region
    $region18: #{tpu_custom_call.1} parent=1 // pred_check
      _
    $region19: #{tpu_custom_call.1} parent=1 // pred_check_branch
      %32 = sbr.rel (0) target = $region21
    $region20: #{tpu_custom_call.1} parent=1 // pred_region
      _
    $region21: #{tpu_custom_call.1} parent=1 // pred_fallthru
      _
    // Predicated region
    $region22: #{tpu_custom_call.1} parent=1 // pred_check
      _
    $region23: #{tpu_custom_call.1} parent=1 // pred_check_branch
      %34 = sbr.rel (0) target = $region25
    $region24: #{tpu_custom_call.1} parent=1 // pred_region
      _
    $region25: #{tpu_custom_call.1} parent=1 // pred_fallthru
      _
    // Predicated region
    $region26: #{tpu_custom_call.1} parent=1 // pred_check
      _
    $region27: #{tpu_custom_call.1} parent=1 // pred_check_branch
      %36 = sbr.rel (0) target = $region29
    $region28: #{tpu_custom_call.1} parent=1 // pred_region
      %37 = dma.done [#allocation3], 256
    $region29: #{tpu_custom_call.1} parent=1 // pred_fallthru
      _
    %v38 = vld [vmem:[#allocation2] sm:$0xff]
    %v39 = vld [vmem:[#allocation2 + $0x8] sm:$0xff]
    %v40 = vld [vmem:[%s5] sm:$0xf]
    %vm41 = vcmask 261120
    %v42 = vsel %vm41, %v38, 0.0
    %43 = vadd.xlane.f32.xlu0 %v42
    %v44 = vpop.xlane.xlu0 %43
    %v45 = vsel %vm41, %v39, 0.0
    %46 = vadd.xlane.f32.xlu0 %v45
    %v47 = vpop.xlane.xlu0 %46
    %v48 = vrcp.pop 32.0
    %v49 = vmul.f32 %v44, %v48
    %v50 = vmul.f32 %v47, %v48
    %v51 = vsub.f32 %v38, %v49
    %v52 = vsub.f32 %v39, %v50
    %v53 = vmul.f32 %v51, %v51
    %v54 = vmul.f32 %v52, %v52
    %v55 = vsel %vm41, %v53, 0.0
    %56 = vadd.xlane.f32.xlu0 %v55
    %v57 = vpop.xlane.xlu0 %56
    %v58 = vsel %vm41, %v54, 0.0
    %59 = vadd.xlane.f32.xlu0 %v58
    %v60 = vpop.xlane.xlu0 %59
    %v61 = vmul.f32 %v57, %v48
    %v62 = vmul.f32 %v60, %v48
    %v63 = vadd.f32 %v61, 1e-06
    %v64 = vadd.f32 %v62, 1e-06
    %v65 = vrsqrt.pop %v63
    %v66 = vrsqrt.pop %v64
    %v67 = vmul.f32 %v51, %v65
    %v68 = vmul.f32 %v52, %v66
    %v69 = vld [vmem:[%s1] sm:$0xff]
    %v70 = vld [vmem:[%s1 + $0x8] sm:$0xff]
    %v71 = vld [vmem:[%s1 + $0x10] sm:$0xff]
    %v72 = vld [vmem:[%s1 + $0x18] sm:$0xff]
    %v73 = vlaneseq
    %v74 = vshrl.u32 %v73, 7
    %v75 = vsub.s32 0, %v74
    %v76 = vrot.slane %v40, %v75
    %v78 = vsel %vm41, %v67, 0
    %v81 = vsel %vm41, %v68, 0
    %83 = vmatprep.subr.mxu0 0.0
    %84 = vmatpush1.msra.mxu0 %v69
    %85 = vmatprep.subr.mxu0 0.0
    %86 = vmatpush1.msra.mxu0 %v70
    %87 = vmatprep.subr.mxu0 0.0
    %88 = vmatpush1.msra.mxu0 %v71
    %89 = vmatprep.subr.mxu0 0.0
    %90 = vmatpush1.msra.mxu0 %v72
    %91 = vmatprep.subr.mxu0 0.0
    %92 = vmatpush1.msra.mxu0 0.0
    %93 = vmatprep.subr.mxu0 0.0
    %94 = vmatpush1.msra.mxu0 0.0
    %95 = vmatprep.subr.mxu0 0.0
    %96 = vmatpush1.msra.mxu0 0.0
    %97 = vmatprep.subr.mxu0 0.0
    %98 = vmatpush1.msra.mxu0 0.0
    %99 = vmatprep.subr.mxu0 0.0
    %100 = vmatpush1.msra.mxu0 0.0
    %101 = vmatprep.subr.mxu0 0.0
    %102 = vmatpush1.msra.mxu0 0.0
    %103 = vmatprep.subr.mxu0 0.0
    %104 = vmatpush1.msra.mxu0 0.0
    %105 = vmatprep.subr.mxu0 0.0
    %106 = vmatpush1.msra.mxu0 0.0
    %107 = vmatprep.subr.mxu0 0.0
    %108 = vmatpush1.msra.mxu0 0.0
    %109 = vmatprep.subr.mxu0 0.0
    %110 = vmatpush1.msra.mxu0 0.0
    %111 = vmatprep.subr.mxu0 0.0
    %112 = vmatpush1.msra.mxu0 0.0
    %113 = vmatprep.subr.mxu0 0.0
    %114 = vmatpush1.msra.mxu0 0.0
    %115 = vmatprep.subr.mxu0 0.0
    %116 = vmatpush1.msra.mxu0 0.0
    %117 = vmatprep.subr.mxu0 0.0
    %118 = vmatpush1.msra.mxu0 0.0
    %119 = vmatprep.subr.mxu0 0.0
    %120 = vmatpush1.msra.mxu0 0.0
    %121 = vmatprep.subr.mxu0 0.0
    %122 = vmatpush1.msra.mxu0 0.0
    %123 = vmatprep.subr.mxu0 0.0
    %124 = vmatpush1.msra.mxu0 0.0
    %125 = vmatprep.subr.mxu0 0.0
    %126 = vmatpush1.msra.mxu0 0.0
    %127 = vmatprep.subr.mxu0 0.0
    %128 = vmatpush1.msra.mxu0 0.0
    %129 = vmatprep.subr.mxu0 0.0
    %130 = vmatpush1.msra.mxu0 0.0
    %131 = vmatprep.subr.mxu0 0.0
    %132 = vmatpush1.msra.mxu0 0.0
    %133 = vmatprep.subr.mxu0 0.0
    %134 = vmatpush1.msra.mxu0 0.0
    %135 = vmatprep.subr.mxu0 0.0
    %136 = vmatpush1.msra.mxu0 0.0
    %137 = vmatprep.subr.mxu0 0.0
    %138 = vmatpush1.msra.mxu0 0.0
    %139 = vmatprep.subr.mxu0 0.0
    %140 = vmatpush1.msra.mxu0 0.0
    %141 = vmatprep.subr.mxu0 0.0
    %142 = vmatpush1.msra.mxu0 0.0
    %143 = vmatprep.subr.mxu0 0.0
    %144 = vmatpush1.msra.mxu0 0.0
    %145 = vmatprep.subr.mxu0 0.0
    %146 = vmatpush1.msra.mxu0 0.0
    %147 = vmatprep.mubr.f32.mxu0 0.0
    %148 = vmatmul.mubr.f32.gmra.mrb[0].mxu0 %v78
    %v149 = vpop.f32.mrb[0].mxu0
    %v150 = vadd.f32 %v76, %v149
    %v151 = vpop.f32.mrb[0].mxu0
    %152 = vmatprep.mubr.f32.mxu0 0.0
    %153 = vmatmul.mubr.f32.gmra.mrb[0].mxu0 %v81
    %v154 = vpop.f32.mrb[0].mxu0
    %v155 = vadd.f32 %v76, %v154
    %v156 = vpop.f32.mrb[0].mxu0
    %157 = vdwg.mxu0
    %160 = vrot.lane.b32.xlu0 %v150, 120
    %v161 = vpop.permute.xlu0 %160
    %162 = vrot.lane.b32.xlu0 %v155, 120
    %v163 = vpop.permute.xlu0 %162
    %164 = vrot.lane.b32.xlu0 %v150, 112
    %v165 = vpop.permute.xlu0 %164
    %166 = vrot.lane.b32.xlu0 %v155, 112
    %v167 = vpop.permute.xlu0 %166
    %168 = vrot.lane.b32.xlu0 %v150, 104
    %v169 = vpop.permute.xlu0 %168
    %170 = vrot.lane.b32.xlu0 %v155, 104
    %v171 = vpop.permute.xlu0 %170
    %172 = vrot.lane.b32.xlu0 %v150, 96
    %v173 = vpop.permute.xlu0 %172
    %vm174 = vcmask 64512
    %v175 = vsel %vm174, %v150, 0
    %v177 = vsel %vm174, %v173, 0
    %179 = vmatprep.subr.mxu0 0.0
    %180 = vmatpush1.xpose.msra.mxu0 %v177
    %181 = vmatprep.subr.mxu0 0.0
    %182 = vmatpush1.xpose.msra.mxu0 0.0
    %183 = vmatprep.subr.mxu0 0.0
    %184 = vmatpush1.xpose.msra.mxu0 0.0
    %185 = vmatprep.subr.mxu0 0.0
    %186 = vmatpush1.xpose.msra.mxu0 0.0
    %187 = vmatprep.subr.mxu0 0.0
    %188 = vmatpush1.xpose.msra.mxu0 0.0
    %189 = vmatprep.subr.mxu0 0.0
    %190 = vmatpush1.xpose.msra.mxu0 0.0
    %191 = vmatprep.subr.mxu0 0.0
    %192 = vmatpush1.xpose.msra.mxu0 0.0
    %193 = vmatprep.subr.mxu0 0.0
    %194 = vmatpush1.xpose.msra.mxu0 0.0
    %195 = vmatprep.subr.mxu0 0.0
    %196 = vmatpush1.xpose.msra.mxu0 0.0
    %197 = vmatprep.subr.mxu0 0.0
    %198 = vmatpush1.xpose.msra.mxu0 0.0
    %199 = vmatprep.subr.mxu0 0.0
    %200 = vmatpush1.xpose.msra.mxu0 0.0
    %201 = vmatprep.subr.mxu0 0.0
    %202 = vmatpush1.xpose.msra.mxu0 0.0
    %203 = vmatprep.subr.mxu0 0.0
    %204 = vmatpush1.xpose.msra.mxu0 0.0
    %205 = vmatprep.subr.mxu0 0.0
    %206 = vmatpush1.xpose.msra.mxu0 0.0
    %207 = vmatprep.subr.mxu0 0.0
    %208 = vmatpush1.xpose.msra.mxu0 0.0
    %209 = vmatprep.subr.mxu0 0.0
    %210 = vmatpush1.xpose.msra.mxu0 0.0
    %211 = vmatprep.subr.mxu0 0.0
    %212 = vmatpush1.xpose.msra.mxu0 0.0
    %213 = vmatprep.subr.mxu0 0.0
    %214 = vmatpush1.xpose.msra.mxu0 0.0
    %215 = vmatprep.subr.mxu0 0.0
    %216 = vmatpush1.xpose.msra.mxu0 0.0
    %217 = vmatprep.subr.mxu0 0.0
    %218 = vmatpush1.xpose.msra.mxu0 0.0
    %219 = vmatprep.subr.mxu0 0.0
    %220 = vmatpush1.xpose.msra.mxu0 0.0
    %221 = vmatprep.subr.mxu0 0.0
    %222 = vmatpush1.xpose.msra.mxu0 0.0
    %223 = vmatprep.subr.mxu0 0.0
    %224 = vmatpush1.xpose.msra.mxu0 0.0
    %225 = vmatprep.subr.mxu0 0.0
    %226 = vmatpush1.xpose.msra.mxu0 0.0
    %227 = vmatprep.subr.mxu0 0.0
    %228 = vmatpush1.xpose.msra.mxu0 0.0
    %229 = vmatprep.subr.mxu0 0.0
    %230 = vmatpush1.xpose.msra.mxu0 0.0
    %231 = vmatprep.subr.mxu0 0.0
    %232 = vmatpush1.xpose.msra.mxu0 0.0
    %233 = vmatprep.subr.mxu0 0.0
    %234 = vmatpush1.xpose.msra.mxu0 0.0
    %235 = vmatprep.subr.mxu0 0.0
    %236 = vmatpush1.xpose.msra.mxu0 0.0
    %237 = vmatprep.subr.mxu0 0.0
    %238 = vmatpush1.xpose.msra.mxu0 0.0
    %239 = vmatprep.subr.mxu0 0.0
    %240 = vmatpush1.xpose.msra.mxu0 0.0
    %241 = vmatprep.subr.mxu0 0.0
    %242 = vmatpush1.xpose.msra.mxu0 0.0
    %243 = vmatprep.mubr.f32.mxu0 0.0
    %244 = vmatmul.mubr.f32.gmra.mrb[0].mxu0 %v175
    %v245 = vpop.f32.mrb[0].mxu0
    %v246 = vadd.f32 0.0, %v245
    %v247 = vpop.f32.mrb[0].mxu0
    %248 = vdwg.mxu0
    %249 = vrot.lane.b32.xlu0 %v155, 96
    %v250 = vpop.permute.xlu0 %249
    %v251 = vsel %vm174, %v155, 0
    %v253 = vsel %vm174, %v250, 0
    %255 = vmatprep.subr.mxu0 0.0
    %256 = vmatpush1.xpose.msra.mxu0 %v253
    %257 = vmatprep.subr.mxu0 0.0
    %258 = vmatpush1.xpose.msra.mxu0 0.0
    %259 = vmatprep.subr.mxu0 0.0
    %260 = vmatpush1.xpose.msra.mxu0 0.0
    %261 = vmatprep.subr.mxu0 0.0
    %262 = vmatpush1.xpose.msra.mxu0 0.0
    %263 = vmatprep.subr.mxu0 0.0
    %264 = vmatpush1.xpose.msra.mxu0 0.0
    %265 = vmatprep.subr.mxu0 0.0
    %266 = vmatpush1.xpose.msra.mxu0 0.0
    %267 = vmatprep.subr.mxu0 0.0
    %268 = vmatpush1.xpose.msra.mxu0 0.0
    %269 = vmatprep.subr.mxu0 0.0
    %270 = vmatpush1.xpose.msra.mxu0 0.0
    %271 = vmatprep.subr.mxu0 0.0
    %272 = vmatpush1.xpose.msra.mxu0 0.0
    %273 = vmatprep.subr.mxu0 0.0
    %274 = vmatpush1.xpose.msra.mxu0 0.0
    %275 = vmatprep.subr.mxu0 0.0
    %276 = vmatpush1.xpose.msra.mxu0 0.0
    %277 = vmatprep.subr.mxu0 0.0
    %278 = vmatpush1.xpose.msra.mxu0 0.0
    %279 = vmatprep.subr.mxu0 0.0
    %280 = vmatpush1.xpose.msra.mxu0 0.0
    %281 = vmatprep.subr.mxu0 0.0
    %282 = vmatpush1.xpose.msra.mxu0 0.0
    %283 = vmatprep.subr.mxu0 0.0
    %284 = vmatpush1.xpose.msra.mxu0 0.0
    %285 = vmatprep.subr.mxu0 0.0
    %286 = vmatpush1.xpose.msra.mxu0 0.0
    %287 = vmatprep.subr.mxu0 0.0
    %288 = vmatpush1.xpose.msra.mxu0 0.0
    %289 = vmatprep.subr.mxu0 0.0
    %290 = vmatpush1.xpose.msra.mxu0 0.0
    %291 = vmatprep.subr.mxu0 0.0
    %292 = vmatpush1.xpose.msra.mxu0 0.0
    %293 = vmatprep.subr.mxu0 0.0
    %294 = vmatpush1.xpose.msra.mxu0 0.0
    %295 = vmatprep.subr.mxu0 0.0
    %296 = vmatpush1.xpose.msra.mxu0 0.0
    %297 = vmatprep.subr.mxu0 0.0
    %298 = vmatpush1.xpose.msra.mxu0 0.0
    %299 = vmatprep.subr.mxu0 0.0
    %300 = vmatpush1.xpose.msra.mxu0 0.0
    %301 = vmatprep.subr.mxu0 0.0
    %302 = vmatpush1.xpose.msra.mxu0 0.0
    %303 = vmatprep.subr.mxu0 0.0
    %304 = vmatpush1.xpose.msra.mxu0 0.0
    %305 = vmatprep.subr.mxu0 0.0
    %306 = vmatpush1.xpose.msra.mxu0 0.0
    %307 = vmatprep.subr.mxu0 0.0
    %308 = vmatpush1.xpose.msra.mxu0 0.0
    %309 = vmatprep.subr.mxu0 0.0
    %310 = vmatpush1.xpose.msra.mxu0 0.0
    %311 = vmatprep.subr.mxu0 0.0
    %312 = vmatpush1.xpose.msra.mxu0 0.0
    %313 = vmatprep.subr.mxu0 0.0
    %314 = vmatpush1.xpose.msra.mxu0 0.0
    %315 = vmatprep.subr.mxu0 0.0
    %316 = vmatpush1.xpose.msra.mxu0 0.0
    %317 = vmatprep.subr.mxu0 0.0
    %318 = vmatpush1.xpose.msra.mxu0 0.0
    %319 = vmatprep.mubr.f32.mxu0 0.0
    %320 = vmatmul.mubr.f32.gmra.mrb[0].mxu0 %v251
    %v321 = vpop.f32.mrb[0].mxu0
    %v322 = vadd.f32 0.0, %v321
    %v323 = vpop.f32.mrb[0].mxu0
    %324 = vdwg.mxu0
    %325 = vrot.lane.b32.xlu0 %v161, 96
    %v326 = vpop.permute.xlu0 %325
    %v327 = vsel %vm174, %v161, 0
    %v329 = vsel %vm174, %v326, 0
    %331 = vmatprep.subr.mxu0 0.0
    %332 = vmatpush1.xpose.msra.mxu0 %v329
    %333 = vmatprep.subr.mxu0 0.0
    %334 = vmatpush1.xpose.msra.mxu0 0.0
    %335 = vmatprep.subr.mxu0 0.0
    %336 = vmatpush1.xpose.msra.mxu0 0.0
    %337 = vmatprep.subr.mxu0 0.0
    %338 = vmatpush1.xpose.msra.mxu0 0.0
    %339 = vmatprep.subr.mxu0 0.0
    %340 = vmatpush1.xpose.msra.mxu0 0.0
    %341 = vmatprep.subr.mxu0 0.0
    %342 = vmatpush1.xpose.msra.mxu0 0.0
    %343 = vmatprep.subr.mxu0 0.0
    %344 = vmatpush1.xpose.msra.mxu0 0.0
    %345 = vmatprep.subr.mxu0 0.0
    %346 = vmatpush1.xpose.msra.mxu0 0.0
    %347 = vmatprep.subr.mxu0 0.0
    %348 = vmatpush1.xpose.msra.mxu0 0.0
    %349 = vmatprep.subr.mxu0 0.0
    %350 = vmatpush1.xpose.msra.mxu0 0.0
    %351 = vmatprep.subr.mxu0 0.0
    %352 = vmatpush1.xpose.msra.mxu0 0.0
    %353 = vmatprep.subr.mxu0 0.0
    %354 = vmatpush1.xpose.msra.mxu0 0.0
    %355 = vmatprep.subr.mxu0 0.0
    %356 = vmatpush1.xpose.msra.mxu0 0.0
    %357 = vmatprep.subr.mxu0 0.0
    %358 = vmatpush1.xpose.msra.mxu0 0.0
    %359 = vmatprep.subr.mxu0 0.0
    %360 = vmatpush1.xpose.msra.mxu0 0.0
    %361 = vmatprep.subr.mxu0 0.0
    %362 = vmatpush1.xpose.msra.mxu0 0.0
    %363 = vmatprep.subr.mxu0 0.0
    %364 = vmatpush1.xpose.msra.mxu0 0.0
    %365 = vmatprep.subr.mxu0 0.0
    %366 = vmatpush1.xpose.msra.mxu0 0.0
    %367 = vmatprep.subr.mxu0 0.0
    %368 = vmatpush1.xpose.msra.mxu0 0.0
    %369 = vmatprep.subr.mxu0 0.0
    %370 = vmatpush1.xpose.msra.mxu0 0.0
    %371 = vmatprep.subr.mxu0 0.0
    %372 = vmatpush1.xpose.msra.mxu0 0.0
    %373 = vmatprep.subr.mxu0 0.0
    %374 = vmatpush1.xpose.msra.mxu0 0.0
    %375 = vmatprep.subr.mxu0 0.0
    %376 = vmatpush1.xpose.msra.mxu0 0.0
    %377 = vmatprep.subr.mxu0 0.0
    %378 = vmatpush1.xpose.msra.mxu0 0.0
    %379 = vmatprep.subr.mxu0 0.0
    %380 = vmatpush1.xpose.msra.mxu0 0.0
    %381 = vmatprep.subr.mxu0 0.0
    %382 = vmatpush1.xpose.msra.mxu0 0.0
    %383 = vmatprep.subr.mxu0 0.0
    %384 = vmatpush1.xpose.msra.mxu0 0.0
    %385 = vmatprep.subr.mxu0 0.0
    %386 = vmatpush1.xpose.msra.mxu0 0.0
    %387 = vmatprep.subr.mxu0 0.0
    %388 = vmatpush1.xpose.msra.mxu0 0.0
    %389 = vmatprep.subr.mxu0 0.0
    %390 = vmatpush1.xpose.msra.mxu0 0.0
    %391 = vmatprep.subr.mxu0 0.0
    %392 = vmatpush1.xpose.msra.mxu0 0.0
    %393 = vmatprep.subr.mxu0 0.0
    %394 = vmatpush1.xpose.msra.mxu0 0.0
    %395 = vmatprep.mubr.f32.mxu0 0.0
    %396 = vmatmul.mubr.f32.gmra.mrb[0].mxu0 %v327
    %v397 = vpop.f32.mrb[0].mxu0
    %v398 = vadd.f32 0.0, %v397
    %v399 = vpop.f32.mrb[0].mxu0
    %400 = vdwg.mxu0
    %401 = vrot.lane.b32.xlu0 %v163, 96
    %v402 = vpop.permute.xlu0 %401
    %v403 = vsel %vm174, %v163, 0
    %v405 = vsel %vm174, %v402, 0
    %407 = vmatprep.subr.mxu0 0.0
    %408 = vmatpush1.xpose.msra.mxu0 %v405
    %409 = vmatprep.subr.mxu0 0.0
    %410 = vmatpush1.xpose.msra.mxu0 0.0
    %411 = vmatprep.subr.mxu0 0.0
    %412 = vmatpush1.xpose.msra.mxu0 0.0
    %413 = vmatprep.subr.mxu0 0.0
    %414 = vmatpush1.xpose.msra.mxu0 0.0
    %415 = vmatprep.subr.mxu0 0.0
    %416 = vmatpush1.xpose.msra.mxu0 0.0
    %417 = vmatprep.subr.mxu0 0.0
    %418 = vmatpush1.xpose.msra.mxu0 0.0
    %419 = vmatprep.subr.mxu0 0.0
    %420 = vmatpush1.xpose.msra.mxu0 0.0
    %421 = vmatprep.subr.mxu0 0.0
    %422 = vmatpush1.xpose.msra.mxu0 0.0
    %423 = vmatprep.subr.mxu0 0.0
    %424 = vmatpush1.xpose.msra.mxu0 0.0
    %425 = vmatprep.subr.mxu0 0.0
    %426 = vmatpush1.xpose.msra.mxu0 0.0
    %427 = vmatprep.subr.mxu0 0.0
    %428 = vmatpush1.xpose.msra.mxu0 0.0
    %429 = vmatprep.subr.mxu0 0.0
    %430 = vmatpush1.xpose.msra.mxu0 0.0
    %431 = vmatprep.subr.mxu0 0.0
    %432 = vmatpush1.xpose.msra.mxu0 0.0
    %433 = vmatprep.subr.mxu0 0.0
    %434 = vmatpush1.xpose.msra.mxu0 0.0
    %435 = vmatprep.subr.mxu0 0.0
    %436 = vmatpush1.xpose.msra.mxu0 0.0
    %437 = vmatprep.subr.mxu0 0.0
    %438 = vmatpush1.xpose.msra.mxu0 0.0
    %439 = vmatprep.subr.mxu0 0.0
    %440 = vmatpush1.xpose.msra.mxu0 0.0
    %441 = vmatprep.subr.mxu0 0.0
    %442 = vmatpush1.xpose.msra.mxu0 0.0
    %443 = vmatprep.subr.mxu0 0.0
    %444 = vmatpush1.xpose.msra.mxu0 0.0
    %445 = vmatprep.subr.mxu0 0.0
    %446 = vmatpush1.xpose.msra.mxu0 0.0
    %447 = vmatprep.subr.mxu0 0.0
    %448 = vmatpush1.xpose.msra.mxu0 0.0
    %449 = vmatprep.subr.mxu0 0.0
    %450 = vmatpush1.xpose.msra.mxu0 0.0
    %451 = vmatprep.subr.mxu0 0.0
    %452 = vmatpush1.xpose.msra.mxu0 0.0
    %453 = vmatprep.subr.mxu0 0.0
    %454 = vmatpush1.xpose.msra.mxu0 0.0
    %455 = vmatprep.subr.mxu0 0.0
    %456 = vmatpush1.xpose.msra.mxu0 0.0
    %457 = vmatprep.subr.mxu0 0.0
    %458 = vmatpush1.xpose.msra.mxu0 0.0
    %459 = vmatprep.subr.mxu0 0.0
    %460 = vmatpush1.xpose.msra.mxu0 0.0
    %461 = vmatprep.subr.mxu0 0.0
    %462 = vmatpush1.xpose.msra.mxu0 0.0
    %463 = vmatprep.subr.mxu0 0.0
    %464 = vmatpush1.xpose.msra.mxu0 0.0
    %465 = vmatprep.subr.mxu0 0.0
    %466 = vmatpush1.xpose.msra.mxu0 0.0
    %467 = vmatprep.subr.mxu0 0.0
    %468 = vmatpush1.xpose.msra.mxu0 0.0
    %469 = vmatprep.subr.mxu0 0.0
    %470 = vmatpush1.xpose.msra.mxu0 0.0
    %471 = vmatprep.mubr.f32.mxu0 0.0
    %472 = vmatmul.mubr.f32.gmra.mrb[0].mxu0 %v403
    %v473 = vpop.f32.mrb[0].mxu0
    %v474 = vadd.f32 0.0, %v473
    %v475 = vpop.f32.mrb[0].mxu0
    %476 = vdwg.mxu0
    %477 = vrot.lane.b32.xlu0 %v165, 96
    %v478 = vpop.permute.xlu0 %477
    %v479 = vsel %vm174, %v165, 0
    %v481 = vsel %vm174, %v478, 0
    %483 = vmatprep.subr.mxu0 0.0
    %484 = vmatpush1.xpose.msra.mxu0 %v481
    %485 = vmatprep.subr.mxu0 0.0
    %486 = vmatpush1.xpose.msra.mxu0 0.0
    %487 = vmatprep.subr.mxu0 0.0
    %488 = vmatpush1.xpose.msra.mxu0 0.0
    %489 = vmatprep.subr.mxu0 0.0
    %490 = vmatpush1.xpose.msra.mxu0 0.0
    %491 = vmatprep.subr.mxu0 0.0
    %492 = vmatpush1.xpose.msra.mxu0 0.0
    %493 = vmatprep.subr.mxu0 0.0
    %494 = vmatpush1.xpose.msra.mxu0 0.0
    %495 = vmatprep.subr.mxu0 0.0
    %496 = vmatpush1.xpose.msra.mxu0 0.0
    %497 = vmatprep.subr.mxu0 0.0
    %498 = vmatpush1.xpose.msra.mxu0 0.0
    %499 = vmatprep.subr.mxu0 0.0
    %500 = vmatpush1.xpose.msra.mxu0 0.0
    %501 = vmatprep.subr.mxu0 0.0
    %502 = vmatpush1.xpose.msra.mxu0 0.0
    %503 = vmatprep.subr.mxu0 0.0
    %504 = vmatpush1.xpose.msra.mxu0 0.0
    %505 = vmatprep.subr.mxu0 0.0
    %506 = vmatpush1.xpose.msra.mxu0 0.0
    %507 = vmatprep.subr.mxu0 0.0
    %508 = vmatpush1.xpose.msra.mxu0 0.0
    %509 = vmatprep.subr.mxu0 0.0
    %510 = vmatpush1.xpose.msra.mxu0 0.0
    %511 = vmatprep.subr.mxu0 0.0
    %512 = vmatpush1.xpose.msra.mxu0 0.0
    %513 = vmatprep.subr.mxu0 0.0
    %514 = vmatpush1.xpose.msra.mxu0 0.0
    %515 = vmatprep.subr.mxu0 0.0
    %516 = vmatpush1.xpose.msra.mxu0 0.0
    %517 = vmatprep.subr.mxu0 0.0
    %518 = vmatpush1.xpose.msra.mxu0 0.0
    %519 = vmatprep.subr.mxu0 0.0
    %520 = vmatpush1.xpose.msra.mxu0 0.0
    %521 = vmatprep.subr.mxu0 0.0
    %522 = vmatpush1.xpose.msra.mxu0 0.0
    %523 = vmatprep.subr.mxu0 0.0
    %524 = vmatpush1.xpose.msra.mxu0 0.0
    %525 = vmatprep.subr.mxu0 0.0
    %526 = vmatpush1.xpose.msra.mxu0 0.0
    %527 = vmatprep.subr.mxu0 0.0
    %528 = vmatpush1.xpose.msra.mxu0 0.0
    %529 = vmatprep.subr.mxu0 0.0
    %530 = vmatpush1.xpose.msra.mxu0 0.0
    %531 = vmatprep.subr.mxu0 0.0
    %532 = vmatpush1.xpose.msra.mxu0 0.0
    %533 = vmatprep.subr.mxu0 0.0
    %534 = vmatpush1.xpose.msra.mxu0 0.0
    %535 = vmatprep.subr.mxu0 0.0
    %536 = vmatpush1.xpose.msra.mxu0 0.0
    %537 = vmatprep.subr.mxu0 0.0
    %538 = vmatpush1.xpose.msra.mxu0 0.0
    %539 = vmatprep.subr.mxu0 0.0
    %540 = vmatpush1.xpose.msra.mxu0 0.0
    %541 = vmatprep.subr.mxu0 0.0
    %542 = vmatpush1.xpose.msra.mxu0 0.0
    %543 = vmatprep.subr.mxu0 0.0
    %544 = vmatpush1.xpose.msra.mxu0 0.0
    %545 = vmatprep.subr.mxu0 0.0
    %546 = vmatpush1.xpose.msra.mxu0 0.0
    %547 = vmatprep.mubr.f32.mxu0 0.0
    %548 = vmatmul.mubr.f32.gmra.mrb[0].mxu0 %v479
    %v549 = vpop.f32.mrb[0].mxu0
    %v550 = vadd.f32 0.0, %v549
    %v551 = vpop.f32.mrb[0].mxu0
    %552 = vdwg.mxu0
    %553 = vrot.lane.b32.xlu0 %v167, 96
    %v554 = vpop.permute.xlu0 %553
    %v555 = vsel %vm174, %v167, 0
    %v557 = vsel %vm174, %v554, 0
    %559 = vmatprep.subr.mxu0 0.0
    %560 = vmatpush1.xpose.msra.mxu0 %v557
    %561 = vmatprep.subr.mxu0 0.0
    %562 = vmatpush1.xpose.msra.mxu0 0.0
    %563 = vmatprep.subr.mxu0 0.0
    %564 = vmatpush1.xpose.msra.mxu0 0.0
    %565 = vmatprep.subr.mxu0 0.0
    %566 = vmatpush1.xpose.msra.mxu0 0.0
    %567 = vmatprep.subr.mxu0 0.0
    %568 = vmatpush1.xpose.msra.mxu0 0.0
    %569 = vmatprep.subr.mxu0 0.0
    %570 = vmatpush1.xpose.msra.mxu0 0.0
    %571 = vmatprep.subr.mxu0 0.0
    %572 = vmatpush1.xpose.msra.mxu0 0.0
    %573 = vmatprep.subr.mxu0 0.0
    %574 = vmatpush1.xpose.msra.mxu0 0.0
    %575 = vmatprep.subr.mxu0 0.0
    %576 = vmatpush1.xpose.msra.mxu0 0.0
    %577 = vmatprep.subr.mxu0 0.0
    %578 = vmatpush1.xpose.msra.mxu0 0.0
    %579 = vmatprep.subr.mxu0 0.0
    %580 = vmatpush1.xpose.msra.mxu0 0.0
    %581 = vmatprep.subr.mxu0 0.0
    %582 = vmatpush1.xpose.msra.mxu0 0.0
    %583 = vmatprep.subr.mxu0 0.0
    %584 = vmatpush1.xpose.msra.mxu0 0.0
    %585 = vmatprep.subr.mxu0 0.0
    %586 = vmatpush1.xpose.msra.mxu0 0.0
    %587 = vmatprep.subr.mxu0 0.0
    %588 = vmatpush1.xpose.msra.mxu0 0.0
    %589 = vmatprep.subr.mxu0 0.0
    %590 = vmatpush1.xpose.msra.mxu0 0.0
    %591 = vmatprep.subr.mxu0 0.0
    %592 = vmatpush1.xpose.msra.mxu0 0.0
    %593 = vmatprep.subr.mxu0 0.0
    %594 = vmatpush1.xpose.msra.mxu0 0.0
    %595 = vmatprep.subr.mxu0 0.0
    %596 = vmatpush1.xpose.msra.mxu0 0.0
    %597 = vmatprep.subr.mxu0 0.0
    %598 = vmatpush1.xpose.msra.mxu0 0.0
    %599 = vmatprep.subr.mxu0 0.0
    %600 = vmatpush1.xpose.msra.mxu0 0.0
    %601 = vmatprep.subr.mxu0 0.0
    %602 = vmatpush1.xpose.msra.mxu0 0.0
    %603 = vmatprep.subr.mxu0 0.0
    %604 = vmatpush1.xpose.msra.mxu0 0.0
    %605 = vmatprep.subr.mxu0 0.0
    %606 = vmatpush1.xpose.msra.mxu0 0.0
    %607 = vmatprep.subr.mxu0 0.0
    %608 = vmatpush1.xpose.msra.mxu0 0.0
    %609 = vmatprep.subr.mxu0 0.0
    %610 = vmatpush1.xpose.msra.mxu0 0.0
    %611 = vmatprep.subr.mxu0 0.0
    %612 = vmatpush1.xpose.msra.mxu0 0.0
    %613 = vmatprep.subr.mxu0 0.0
    %614 = vmatpush1.xpose.msra.mxu0 0.0
    %615 = vmatprep.subr.mxu0 0.0
    %616 = vmatpush1.xpose.msra.mxu0 0.0
    %617 = vmatprep.subr.mxu0 0.0
    %618 = vmatpush1.xpose.msra.mxu0 0.0
    %619 = vmatprep.subr.mxu0 0.0
    %620 = vmatpush1.xpose.msra.mxu0 0.0
    %621 = vmatprep.subr.mxu0 0.0
    %622 = vmatpush1.xpose.msra.mxu0 0.0
    %623 = vmatprep.mubr.f32.mxu0 0.0
    %624 = vmatmul.mubr.f32.gmra.mrb[0].mxu0 %v555
    %v625 = vpop.f32.mrb[0].mxu0
    %v626 = vadd.f32 0.0, %v625
    %v627 = vpop.f32.mrb[0].mxu0
    %628 = vdwg.mxu0
    %629 = vrot.lane.b32.xlu0 %v169, 96
    %v630 = vpop.permute.xlu0 %629
    %v631 = vsel %vm174, %v169, 0
    %v633 = vsel %vm174, %v630, 0
    %635 = vmatprep.subr.mxu0 0.0
    %636 = vmatpush1.xpose.msra.mxu0 %v633
    %637 = vmatprep.subr.mxu0 0.0
    %638 = vmatpush1.xpose.msra.mxu0 0.0
    %639 = vmatprep.subr.mxu0 0.0
    %640 = vmatpush1.xpose.msra.mxu0 0.0
    %641 = vmatprep.subr.mxu0 0.0
    %642 = vmatpush1.xpose.msra.mxu0 0.0
    %643 = vmatprep.subr.mxu0 0.0
    %644 = vmatpush1.xpose.msra.mxu0 0.0
    %645 = vmatprep.subr.mxu0 0.0
    %646 = vmatpush1.xpose.msra.mxu0 0.0
    %647 = vmatprep.subr.mxu0 0.0
    %648 = vmatpush1.xpose.msra.mxu0 0.0
    %649 = vmatprep.subr.mxu0 0.0
    %650 = vmatpush1.xpose.msra.mxu0 0.0
    %651 = vmatprep.subr.mxu0 0.0
    %652 = vmatpush1.xpose.msra.mxu0 0.0
    %653 = vmatprep.subr.mxu0 0.0
    %654 = vmatpush1.xpose.msra.mxu0 0.0
    %655 = vmatprep.subr.mxu0 0.0
    %656 = vmatpush1.xpose.msra.mxu0 0.0
    %657 = vmatprep.subr.mxu0 0.0
    %658 = vmatpush1.xpose.msra.mxu0 0.0
    %659 = vmatprep.subr.mxu0 0.0
    %660 = vmatpush1.xpose.msra.mxu0 0.0
    %661 = vmatprep.subr.mxu0 0.0
    %662 = vmatpush1.xpose.msra.mxu0 0.0
    %663 = vmatprep.subr.mxu0 0.0
    %664 = vmatpush1.xpose.msra.mxu0 0.0
    %665 = vmatprep.subr.mxu0 0.0
    %666 = vmatpush1.xpose.msra.mxu0 0.0
    %667 = vmatprep.subr.mxu0 0.0
    %668 = vmatpush1.xpose.msra.mxu0 0.0
    %669 = vmatprep.subr.mxu0 0.0
    %670 = vmatpush1.xpose.msra.mxu0 0.0
    %671 = vmatprep.subr.mxu0 0.0
    %672 = vmatpush1.xpose.msra.mxu0 0.0
    %673 = vmatprep.subr.mxu0 0.0
    %674 = vmatpush1.xpose.msra.mxu0 0.0
    %675 = vmatprep.subr.mxu0 0.0
    %676 = vmatpush1.xpose.msra.mxu0 0.0
    %677 = vmatprep.subr.mxu0 0.0
    %678 = vmatpush1.xpose.msra.mxu0 0.0
    %679 = vmatprep.subr.mxu0 0.0
    %680 = vmatpush1.xpose.msra.mxu0 0.0
    %681 = vmatprep.subr.mxu0 0.0
    %682 = vmatpush1.xpose.msra.mxu0 0.0
    %683 = vmatprep.subr.mxu0 0.0
    %684 = vmatpush1.xpose.msra.mxu0 0.0
    %685 = vmatprep.subr.mxu0 0.0
    %686 = vmatpush1.xpose.msra.mxu0 0.0
    %687 = vmatprep.subr.mxu0 0.0
    %688 = vmatpush1.xpose.msra.mxu0 0.0
    %689 = vmatprep.subr.mxu0 0.0
    %690 = vmatpush1.xpose.msra.mxu0 0.0
    %691 = vmatprep.subr.mxu0 0.0
    %692 = vmatpush1.xpose.msra.mxu0 0.0
    %693 = vmatprep.subr.mxu0 0.0
    %694 = vmatpush1.xpose.msra.mxu0 0.0
    %695 = vmatprep.subr.mxu0 0.0
    %696 = vmatpush1.xpose.msra.mxu0 0.0
    %697 = vmatprep.subr.mxu0 0.0
    %698 = vmatpush1.xpose.msra.mxu0 0.0
    %699 = vmatprep.mubr.f32.mxu0 0.0
    %700 = vmatmul.mubr.f32.gmra.mrb[0].mxu0 %v631
    %v701 = vpop.f32.mrb[0].mxu0
    %v702 = vadd.f32 0.0, %v701
    %v703 = vpop.f32.mrb[0].mxu0
    %704 = vdwg.mxu0
    %705 = vrot.lane.b32.xlu0 %v171, 96
    %v706 = vpop.permute.xlu0 %705
    %v707 = vsel %vm174, %v171, 0
    %v709 = vsel %vm174, %v706, 0
    %711 = vmatprep.subr.mxu0 0.0
    %712 = vmatpush1.xpose.msra.mxu0 %v709
    %713 = vmatprep.subr.mxu0 0.0
    %714 = vmatpush1.xpose.msra.mxu0 0.0
    %715 = vmatprep.subr.mxu0 0.0
    %716 = vmatpush1.xpose.msra.mxu0 0.0
    %717 = vmatprep.subr.mxu0 0.0
    %718 = vmatpush1.xpose.msra.mxu0 0.0
    %719 = vmatprep.subr.mxu0 0.0
    %720 = vmatpush1.xpose.msra.mxu0 0.0
    %721 = vmatprep.subr.mxu0 0.0
    %722 = vmatpush1.xpose.msra.mxu0 0.0
    %723 = vmatprep.subr.mxu0 0.0
    %724 = vmatpush1.xpose.msra.mxu0 0.0
    %725 = vmatprep.subr.mxu0 0.0
    %726 = vmatpush1.xpose.msra.mxu0 0.0
    %727 = vmatprep.subr.mxu0 0.0
    %728 = vmatpush1.xpose.msra.mxu0 0.0
    %729 = vmatprep.subr.mxu0 0.0
    %730 = vmatpush1.xpose.msra.mxu0 0.0
    %731 = vmatprep.subr.mxu0 0.0
    %732 = vmatpush1.xpose.msra.mxu0 0.0
    %733 = vmatprep.subr.mxu0 0.0
    %734 = vmatpush1.xpose.msra.mxu0 0.0
    %735 = vmatprep.subr.mxu0 0.0
    %736 = vmatpush1.xpose.msra.mxu0 0.0
    %737 = vmatprep.subr.mxu0 0.0
    %738 = vmatpush1.xpose.msra.mxu0 0.0
    %739 = vmatprep.subr.mxu0 0.0
    %740 = vmatpush1.xpose.msra.mxu0 0.0
    %741 = vmatprep.subr.mxu0 0.0
    %742 = vmatpush1.xpose.msra.mxu0 0.0
    %743 = vmatprep.subr.mxu0 0.0
    %744 = vmatpush1.xpose.msra.mxu0 0.0
    %745 = vmatprep.subr.mxu0 0.0
    %746 = vmatpush1.xpose.msra.mxu0 0.0
    %747 = vmatprep.subr.mxu0 0.0
    %748 = vmatpush1.xpose.msra.mxu0 0.0
    %749 = vmatprep.subr.mxu0 0.0
    %750 = vmatpush1.xpose.msra.mxu0 0.0
    %751 = vmatprep.subr.mxu0 0.0
    %752 = vmatpush1.xpose.msra.mxu0 0.0
    %753 = vmatprep.subr.mxu0 0.0
    %754 = vmatpush1.xpose.msra.mxu0 0.0
    %755 = vmatprep.subr.mxu0 0.0
    %756 = vmatpush1.xpose.msra.mxu0 0.0
    %757 = vmatprep.subr.mxu0 0.0
    %758 = vmatpush1.xpose.msra.mxu0 0.0
    %759 = vmatprep.subr.mxu0 0.0
    %760 = vmatpush1.xpose.msra.mxu0 0.0
    %761 = vmatprep.subr.mxu0 0.0
    %762 = vmatpush1.xpose.msra.mxu0 0.0
    %763 = vmatprep.subr.mxu0 0.0
    %764 = vmatpush1.xpose.msra.mxu0 0.0
    %765 = vmatprep.subr.mxu0 0.0
    %766 = vmatpush1.xpose.msra.mxu0 0.0
    %767 = vmatprep.subr.mxu0 0.0
    %768 = vmatpush1.xpose.msra.mxu0 0.0
    %769 = vmatprep.subr.mxu0 0.0
    %770 = vmatpush1.xpose.msra.mxu0 0.0
    %771 = vmatprep.subr.mxu0 0.0
    %772 = vmatpush1.xpose.msra.mxu0 0.0
    %773 = vmatprep.subr.mxu0 0.0
    %774 = vmatpush1.xpose.msra.mxu0 0.0
    %775 = vmatprep.mubr.f32.mxu0 0.0
    %776 = vmatmul.mubr.f32.gmra.mrb[0].mxu0 %v707
    %v777 = vpop.f32.mrb[0].mxu0
    %v778 = vadd.f32 0.0, %v777
    %v779 = vpop.f32.mrb[0].mxu0
    %780 = vdwg.mxu0
    %v781 = vsel %vm174, %v246, -inf
    %782 = vmax.xlane.f32.xlu0 %v781
    %v783 = vpop.xlane.xlu0 %782
    %v784 = vsel %vm174, %v322, -inf
    %785 = vmax.xlane.f32.xlu0 %v784
    %v786 = vpop.xlane.xlu0 %785
    %v787 = vsel %vm174, %v398, -inf
    %788 = vmax.xlane.f32.xlu0 %v787
    %v789 = vpop.xlane.xlu0 %788
    %v790 = vsel %vm174, %v474, -inf
    %791 = vmax.xlane.f32.xlu0 %v790
    %v792 = vpop.xlane.xlu0 %791
    %v793 = vsel %vm174, %v550, -inf
    %794 = vmax.xlane.f32.xlu0 %v793
    %v795 = vpop.xlane.xlu0 %794
    %v796 = vsel %vm174, %v626, -inf
    %797 = vmax.xlane.f32.xlu0 %v796
    %v798 = vpop.xlane.xlu0 %797
    %v799 = vsel %vm174, %v702, -inf
    %800 = vmax.xlane.f32.xlu0 %v799
    %v801 = vpop.xlane.xlu0 %800
    %v802 = vsel %vm174, %v778, -inf
    %803 = vmax.xlane.f32.xlu0 %v802
    %v804 = vpop.xlane.xlu0 %803
    %v805 = vsub.f32 %v246, %v783
    %v806 = vsub.f32 %v322, %v786
    %v807 = vsub.f32 %v398, %v789
    %v808 = vsub.f32 %v474, %v792
    %v809 = vsub.f32 %v550, %v795
    %v810 = vsub.f32 %v626, %v798
    %v811 = vsub.f32 %v702, %v801
    %v812 = vsub.f32 %v778, %v804
    %v813 = vmul.f32 %v805, 1.442695
    %v814 = vpow.pop %v813
    %v815 = vmul.f32 %v806, 1.442695
    %v816 = vpow.pop %v815
    %v817 = vmul.f32 %v807, 1.442695
    %v818 = vpow.pop %v817
    %v819 = vmul.f32 %v808, 1.442695
    %v820 = vpow.pop %v819
    %v821 = vmul.f32 %v809, 1.442695
    %v822 = vpow.pop %v821
    %v823 = vmul.f32 %v810, 1.442695
    %v824 = vpow.pop %v823
    %v825 = vmul.f32 %v811, 1.442695
    %v826 = vpow.pop %v825
    %v827 = vmul.f32 %v812, 1.442695
    %v828 = vpow.pop %v827
    %v829 = vsel %vm174, %v814, 0.0
    %830 = vadd.xlane.f32.xlu0 %v829
    %v831 = vpop.xlane.xlu0 %830
    %v832 = vsel %vm174, %v816, 0.0
    %833 = vadd.xlane.f32.xlu0 %v832
    %v834 = vpop.xlane.xlu0 %833
    %v835 = vsel %vm174, %v818, 0.0
    %836 = vadd.xlane.f32.xlu0 %v835
    %v837 = vpop.xlane.xlu0 %836
    %v838 = vsel %vm174, %v820, 0.0
    %839 = vadd.xlane.f32.xlu0 %v838
    %v840 = vpop.xlane.xlu0 %839
    %v841 = vsel %vm174, %v822, 0.0
    %842 = vadd.xlane.f32.xlu0 %v841
    %v843 = vpop.xlane.xlu0 %842
    %v844 = vsel %vm174, %v824, 0.0
    %845 = vadd.xlane.f32.xlu0 %v844
    %v846 = vpop.xlane.xlu0 %845
    %v847 = vsel %vm174, %v826, 0.0
    %848 = vadd.xlane.f32.xlu0 %v847
    %v849 = vpop.xlane.xlu0 %848
    %v850 = vsel %vm174, %v828, 0.0
    %851 = vadd.xlane.f32.xlu0 %v850
    %v852 = vpop.xlane.xlu0 %851
    %v853 = vrcp.pop %v831
    %v854 = vrcp.pop %v834
    %v855 = vrcp.pop %v837
    %v856 = vrcp.pop %v840
    %v857 = vrcp.pop %v843
    %v858 = vrcp.pop %v846
    %v859 = vrcp.pop %v849
    %v860 = vrcp.pop %v852
    %v861 = vmul.f32 %v814, %v853
    %v862 = vmul.f32 %v816, %v854
    %v863 = vmul.f32 %v818, %v855
    %v864 = vmul.f32 %v820, %v856
    %v865 = vmul.f32 %v822, %v857
    %v866 = vmul.f32 %v824, %v858
    %v867 = vmul.f32 %v826, %v859
    %v868 = vmul.f32 %v828, %v860
    %869 = vrot.lane.b32.xlu0 %v150, 64
    %v870 = vpop.permute.xlu0 %869
    %v873 = vsel %vm174, %v861, 0
    %875 = vmatprep.subr.mxu0 0.0
    %876 = vmatpush1.msra.mxu0 %v870
    %877 = vmatprep.subr.mxu0 0.0
    %878 = vmatpush1.msra.mxu0 0.0
    %879 = vmatprep.subr.mxu0 0.0
    %880 = vmatpush1.msra.mxu0 0.0
    %881 = vmatprep.subr.mxu0 0.0
    %882 = vmatpush1.msra.mxu0 0.0
    %883 = vmatprep.subr.mxu0 0.0
    %884 = vmatpush1.msra.mxu0 0.0
    %885 = vmatprep.subr.mxu0 0.0
    %886 = vmatpush1.msra.mxu0 0.0
    %887 = vmatprep.subr.mxu0 0.0
    %888 = vmatpush1.msra.mxu0 0.0
    %889 = vmatprep.subr.mxu0 0.0
    %890 = vmatpush1.msra.mxu0 0.0
    %891 = vmatprep.subr.mxu0 0.0
    %892 = vmatpush1.msra.mxu0 0.0
    %893 = vmatprep.subr.mxu0 0.0
    %894 = vmatpush1.msra.mxu0 0.0
    %895 = vmatprep.subr.mxu0 0.0
    %896 = vmatpush1.msra.mxu0 0.0
    %897 = vmatprep.subr.mxu0 0.0
    %898 = vmatpush1.msra.mxu0 0.0
    %899 = vmatprep.subr.mxu0 0.0
    %900 = vmatpush1.msra.mxu0 0.0
    %901 = vmatprep.subr.mxu0 0.0
    %902 = vmatpush1.msra.mxu0 0.0
    %903 = vmatprep.subr.mxu0 0.0
    %904 = vmatpush1.msra.mxu0 0.0
    %905 = vmatprep.subr.mxu0 0.0
    %906 = vmatpush1.msra.mxu0 0.0
    %907 = vmatprep.subr.mxu0 0.0
    %908 = vmatpush1.msra.mxu0 0.0
    %909 = vmatprep.subr.mxu0 0.0
    %910 = vmatpush1.msra.mxu0 0.0
    %911 = vmatprep.subr.mxu0 0.0
    %912 = vmatpush1.msra.mxu0 0.0
    %913 = vmatprep.subr.mxu0 0.0
    %914 = vmatpush1.msra.mxu0 0.0
    %915 = vmatprep.subr.mxu0 0.0
    %916 = vmatpush1.msra.mxu0 0.0
    %917 = vmatprep.subr.mxu0 0.0
    %918 = vmatpush1.msra.mxu0 0.0
    %919 = vmatprep.subr.mxu0 0.0
    %920 = vmatpush1.msra.mxu0 0.0
    %921 = vmatprep.subr.mxu0 0.0
    %922 = vmatpush1.msra.mxu0 0.0
    %923 = vmatprep.subr.mxu0 0.0
    %924 = vmatpush1.msra.mxu0 0.0
    %925 = vmatprep.subr.mxu0 0.0
    %926 = vmatpush1.msra.mxu0 0.0
    %927 = vmatprep.subr.mxu0 0.0
    %928 = vmatpush1.msra.mxu0 0.0
    %929 = vmatprep.subr.mxu0 0.0
    %930 = vmatpush1.msra.mxu0 0.0
    %931 = vmatprep.subr.mxu0 0.0
    %932 = vmatpush1.msra.mxu0 0.0
    %933 = vmatprep.subr.mxu0 0.0
    %934 = vmatpush1.msra.mxu0 0.0
    %935 = vmatprep.subr.mxu0 0.0
    %936 = vmatpush1.msra.mxu0 0.0
    %937 = vmatprep.subr.mxu0 0.0
    %938 = vmatpush1.msra.mxu0 0.0
    %939 = vmatprep.mubr.f32.mxu0 0.0
    %940 = vmatmul.mubr.f32.gmra.mrb[0].mxu0 %v873
    %v941 = vpop.f32.mrb[0].mxu0
    %v942 = vadd.f32 0.0, %v941
    %v943 = vpop.f32.mrb[0].mxu0
    %944 = vdwg.mxu0
    %945 = vrot.lane.b32.xlu0 %v155, 64
    %v946 = vpop.permute.xlu0 %945
    %v949 = vsel %vm174, %v862, 0
    %951 = vmatprep.subr.mxu0 0.0
    %952 = vmatpush1.msra.mxu0 %v946
    %953 = vmatprep.subr.mxu0 0.0
    %954 = vmatpush1.msra.mxu0 0.0
    %955 = vmatprep.subr.mxu0 0.0
    %956 = vmatpush1.msra.mxu0 0.0
    %957 = vmatprep.subr.mxu0 0.0
    %958 = vmatpush1.msra.mxu0 0.0
    %959 = vmatprep.subr.mxu0 0.0
    %960 = vmatpush1.msra.mxu0 0.0
    %961 = vmatprep.subr.mxu0 0.0
    %962 = vmatpush1.msra.mxu0 0.0
    %963 = vmatprep.subr.mxu0 0.0
    %964 = vmatpush1.msra.mxu0 0.0
    %965 = vmatprep.subr.mxu0 0.0
    %966 = vmatpush1.msra.mxu0 0.0
    %967 = vmatprep.subr.mxu0 0.0
    %968 = vmatpush1.msra.mxu0 0.0
    %969 = vmatprep.subr.mxu0 0.0
    %970 = vmatpush1.msra.mxu0 0.0
    %971 = vmatprep.subr.mxu0 0.0
    %972 = vmatpush1.msra.mxu0 0.0
    %973 = vmatprep.subr.mxu0 0.0
    %974 = vmatpush1.msra.mxu0 0.0
    %975 = vmatprep.subr.mxu0 0.0
    %976 = vmatpush1.msra.mxu0 0.0
    %977 = vmatprep.subr.mxu0 0.0
    %978 = vmatpush1.msra.mxu0 0.0
    %979 = vmatprep.subr.mxu0 0.0
    %980 = vmatpush1.msra.mxu0 0.0
    %981 = vmatprep.subr.mxu0 0.0
    %982 = vmatpush1.msra.mxu0 0.0
    %983 = vmatprep.subr.mxu0 0.0
    %984 = vmatpush1.msra.mxu0 0.0
    %985 = vmatprep.subr.mxu0 0.0
    %986 = vmatpush1.msra.mxu0 0.0
    %987 = vmatprep.subr.mxu0 0.0
    %988 = vmatpush1.msra.mxu0 0.0
    %989 = vmatprep.subr.mxu0 0.0
    %990 = vmatpush1.msra.mxu0 0.0
    %991 = vmatprep.subr.mxu0 0.0
    %992 = vmatpush1.msra.mxu0 0.0
    %993 = vmatprep.subr.mxu0 0.0
    %994 = vmatpush1.msra.mxu0 0.0
    %995 = vmatprep.subr.mxu0 0.0
    %996 = vmatpush1.msra.mxu0 0.0
    %997 = vmatprep.subr.mxu0 0.0
    %998 = vmatpush1.msra.mxu0 0.0
    %999 = vmatprep.subr.mxu0 0.0
    %1000 = vmatpush1.msra.mxu0 0.0
    %1001 = vmatprep.subr.mxu0 0.0
    %1002 = vmatpush1.msra.mxu0 0.0
    %1003 = vmatprep.subr.mxu0 0.0
    %1004 = vmatpush1.msra.mxu0 0.0
    %1005 = vmatprep.subr.mxu0 0.0
    %1006 = vmatpush1.msra.mxu0 0.0
    %1007 = vmatprep.subr.mxu0 0.0
    %1008 = vmatpush1.msra.mxu0 0.0
    %1009 = vmatprep.subr.mxu0 0.0
    %1010 = vmatpush1.msra.mxu0 0.0
    %1011 = vmatprep.subr.mxu0 0.0
    %1012 = vmatpush1.msra.mxu0 0.0
    %1013 = vmatprep.subr.mxu0 0.0
    %1014 = vmatpush1.msra.mxu0 0.0
    %1015 = vmatprep.mubr.f32.mxu0 0.0
    %1016 = vmatmul.mubr.f32.gmra.mrb[0].mxu0 %v949
    %v1017 = vpop.f32.mrb[0].mxu0
    %v1018 = vadd.f32 0.0, %v1017
    %v1019 = vpop.f32.mrb[0].mxu0
    %1020 = vdwg.mxu0
    %1021 = vrot.lane.b32.xlu0 %v161, 64
    %v1022 = vpop.permute.xlu0 %1021
    %v1025 = vsel %vm174, %v863, 0
    %1027 = vmatprep.subr.mxu0 0.0
    %1028 = vmatpush1.msra.mxu0 %v1022
    %1029 = vmatprep.subr.mxu0 0.0
    %1030 = vmatpush1.msra.mxu0 0.0
    %1031 = vmatprep.subr.mxu0 0.0
    %1032 = vmatpush1.msra.mxu0 0.0
    %1033 = vmatprep.subr.mxu0 0.0
    %1034 = vmatpush1.msra.mxu0 0.0
    %1035 = vmatprep.subr.mxu0 0.0
    %1036 = vmatpush1.msra.mxu0 0.0
    %1037 = vmatprep.subr.mxu0 0.0
    %1038 = vmatpush1.msra.mxu0 0.0
    %1039 = vmatprep.subr.mxu0 0.0
    %1040 = vmatpush1.msra.mxu0 0.0
    %1041 = vmatprep.subr.mxu0 0.0
    %1042 = vmatpush1.msra.mxu0 0.0
    %1043 = vmatprep.subr.mxu0 0.0
    %1044 = vmatpush1.msra.mxu0 0.0
    %1045 = vmatprep.subr.mxu0 0.0
    %1046 = vmatpush1.msra.mxu0 0.0
    %1047 = vmatprep.subr.mxu0 0.0
    %1048 = vmatpush1.msra.mxu0 0.0
    %1049 = vmatprep.subr.mxu0 0.0
    %1050 = vmatpush1.msra.mxu0 0.0
    %1051 = vmatprep.subr.mxu0 0.0
    %1052 = vmatpush1.msra.mxu0 0.0
    %1053 = vmatprep.subr.mxu0 0.0
    %1054 = vmatpush1.msra.mxu0 0.0
    %1055 = vmatprep.subr.mxu0 0.0
    %1056 = vmatpush1.msra.mxu0 0.0
    %1057 = vmatprep.subr.mxu0 0.0
    %1058 = vmatpush1.msra.mxu0 0.0
    %1059 = vmatprep.subr.mxu0 0.0
    %1060 = vmatpush1.msra.mxu0 0.0
    %1061 = vmatprep.subr.mxu0 0.0
    %1062 = vmatpush1.msra.mxu0 0.0
    %1063 = vmatprep.subr.mxu0 0.0
    %1064 = vmatpush1.msra.mxu0 0.0
    %1065 = vmatprep.subr.mxu0 0.0
    %1066 = vmatpush1.msra.mxu0 0.0
    %1067 = vmatprep.subr.mxu0 0.0
    %1068 = vmatpush1.msra.mxu0 0.0
    %1069 = vmatprep.subr.mxu0 0.0
    %1070 = vmatpush1.msra.mxu0 0.0
    %1071 = vmatprep.subr.mxu0 0.0
    %1072 = vmatpush1.msra.mxu0 0.0
    %1073 = vmatprep.subr.mxu0 0.0
    %1074 = vmatpush1.msra.mxu0 0.0
    %1075 = vmatprep.subr.mxu0 0.0
    %1076 = vmatpush1.msra.mxu0 0.0
    %1077 = vmatprep.subr.mxu0 0.0
    %1078 = vmatpush1.msra.mxu0 0.0
    %1079 = vmatprep.subr.mxu0 0.0
    %1080 = vmatpush1.msra.mxu0 0.0
    %1081 = vmatprep.subr.mxu0 0.0
    %1082 = vmatpush1.msra.mxu0 0.0
    %1083 = vmatprep.subr.mxu0 0.0
    %1084 = vmatpush1.msra.mxu0 0.0
    %1085 = vmatprep.subr.mxu0 0.0
    %1086 = vmatpush1.msra.mxu0 0.0
    %1087 = vmatprep.subr.mxu0 0.0
    %1088 = vmatpush1.msra.mxu0 0.0
    %1089 = vmatprep.subr.mxu0 0.0
    %1090 = vmatpush1.msra.mxu0 0.0
    %1091 = vmatprep.mubr.f32.mxu0 0.0
    %1092 = vmatmul.mubr.f32.gmra.mrb[0].mxu0 %v1025
    %v1093 = vpop.f32.mrb[0].mxu0
    %v1094 = vadd.f32 0.0, %v1093
    %v1095 = vpop.f32.mrb[0].mxu0
    %1096 = vdwg.mxu0
    %1097 = vrot.lane.b32.xlu0 %v163, 64
    %v1098 = vpop.permute.xlu0 %1097
    %v1101 = vsel %vm174, %v864, 0
    %1103 = vmatprep.subr.mxu0 0.0
    %1104 = vmatpush1.msra.mxu0 %v1098
    %1105 = vmatprep.subr.mxu0 0.0
    %1106 = vmatpush1.msra.mxu0 0.0
    %1107 = vmatprep.subr.mxu0 0.0
    %1108 = vmatpush1.msra.mxu0 0.0
    %1109 = vmatprep.subr.mxu0 0.0
    %1110 = vmatpush1.msra.mxu0 0.0
    %1111 = vmatprep.subr.mxu0 0.0
    %1112 = vmatpush1.msra.mxu0 0.0
    %1113 = vmatprep.subr.mxu0 0.0
    %1114 = vmatpush1.msra.mxu0 0.0
    %1115 = vmatprep.subr.mxu0 0.0
    %1116 = vmatpush1.msra.mxu0 0.0
    %1117 = vmatprep.subr.mxu0 0.0
    %1118 = vmatpush1.msra.mxu0 0.0
    %1119 = vmatprep.subr.mxu0 0.0
    %1120 = vmatpush1.msra.mxu0 0.0
    %1121 = vmatprep.subr.mxu0 0.0
    %1122 = vmatpush1.msra.mxu0 0.0
    %1123 = vmatprep.subr.mxu0 0.0
    %1124 = vmatpush1.msra.mxu0 0.0
    %1125 = vmatprep.subr.mxu0 0.0
    %1126 = vmatpush1.msra.mxu0 0.0
    %1127 = vmatprep.subr.mxu0 0.0
    %1128 = vmatpush1.msra.mxu0 0.0
    %1129 = vmatprep.subr.mxu0 0.0
    %1130 = vmatpush1.msra.mxu0 0.0
    %1131 = vmatprep.subr.mxu0 0.0
    %1132 = vmatpush1.msra.mxu0 0.0
    %1133 = vmatprep.subr.mxu0 0.0
    %1134 = vmatpush1.msra.mxu0 0.0
    %1135 = vmatprep.subr.mxu0 0.0
    %1136 = vmatpush1.msra.mxu0 0.0
    %1137 = vmatprep.subr.mxu0 0.0
    %1138 = vmatpush1.msra.mxu0 0.0
    %1139 = vmatprep.subr.mxu0 0.0
    %1140 = vmatpush1.msra.mxu0 0.0
    %1141 = vmatprep.subr.mxu0 0.0
    %1142 = vmatpush1.msra.mxu0 0.0
    %1143 = vmatprep.subr.mxu0 0.0
    %1144 = vmatpush1.msra.mxu0 0.0
    %1145 = vmatprep.subr.mxu0 0.0
    %1146 = vmatpush1.msra.mxu0 0.0
    %1147 = vmatprep.subr.mxu0 0.0
    %1148 = vmatpush1.msra.mxu0 0.0
    %1149 = vmatprep.subr.mxu0 0.0
    %1150 = vmatpush1.msra.mxu0 0.0
    %1151 = vmatprep.subr.mxu0 0.0
    %1152 = vmatpush1.msra.mxu0 0.0
    %1153 = vmatprep.subr.mxu0 0.0
    %1154 = vmatpush1.msra.mxu0 0.0
    %1155 = vmatprep.subr.mxu0 0.0
    %1156 = vmatpush1.msra.mxu0 0.0
    %1157 = vmatprep.subr.mxu0 0.0
    %1158 = vmatpush1.msra.mxu0 0.0
    %1159 = vmatprep.subr.mxu0 0.0
    %1160 = vmatpush1.msra.mxu0 0.0
    %1161 = vmatprep.subr.mxu0 0.0
    %1162 = vmatpush1.msra.mxu0 0.0
    %1163 = vmatprep.subr.mxu0 0.0
    %1164 = vmatpush1.msra.mxu0 0.0
    %1165 = vmatprep.subr.mxu0 0.0
    %1166 = vmatpush1.msra.mxu0 0.0
    %1167 = vmatprep.mubr.f32.mxu0 0.0
    %1168 = vmatmul.mubr.f32.gmra.mrb[0].mxu0 %v1101
    %v1169 = vpop.f32.mrb[0].mxu0
    %v1170 = vadd.f32 0.0, %v1169
    %v1171 = vpop.f32.mrb[0].mxu0
    %1172 = vdwg.mxu0
    %1173 = vrot.lane.b32.xlu0 %v165, 64
    %v1174 = vpop.permute.xlu0 %1173
    %v1177 = vsel %vm174, %v865, 0
    %1179 = vmatprep.subr.mxu0 0.0
    %1180 = vmatpush1.msra.mxu0 %v1174
    %1181 = vmatprep.subr.mxu0 0.0
    %1182 = vmatpush1.msra.mxu0 0.0
    %1183 = vmatprep.subr.mxu0 0.0
    %1184 = vmatpush1.msra.mxu0 0.0
    %1185 = vmatprep.subr.mxu0 0.0
    %1186 = vmatpush1.msra.mxu0 0.0
    %1187 = vmatprep.subr.mxu0 0.0
    %1188 = vmatpush1.msra.mxu0 0.0
    %1189 = vmatprep.subr.mxu0 0.0
    %1190 = vmatpush1.msra.mxu0 0.0
    %1191 = vmatprep.subr.mxu0 0.0
    %1192 = vmatpush1.msra.mxu0 0.0
    %1193 = vmatprep.subr.mxu0 0.0
    %1194 = vmatpush1.msra.mxu0 0.0
    %1195 = vmatprep.subr.mxu0 0.0
    %1196 = vmatpush1.msra.mxu0 0.0
    %1197 = vmatprep.subr.mxu0 0.0
    %1198 = vmatpush1.msra.mxu0 0.0
    %1199 = vmatprep.subr.mxu0 0.0
    %1200 = vmatpush1.msra.mxu0 0.0
    %1201 = vmatprep.subr.mxu0 0.0
    %1202 = vmatpush1.msra.mxu0 0.0
    %1203 = vmatprep.subr.mxu0 0.0
    %1204 = vmatpush1.msra.mxu0 0.0
    %1205 = vmatprep.subr.mxu0 0.0
    %1206 = vmatpush1.msra.mxu0 0.0
    %1207 = vmatprep.subr.mxu0 0.0
    %1208 = vmatpush1.msra.mxu0 0.0
    %1209 = vmatprep.subr.mxu0 0.0
    %1210 = vmatpush1.msra.mxu0 0.0
    %1211 = vmatprep.subr.mxu0 0.0
    %1212 = vmatpush1.msra.mxu0 0.0
    %1213 = vmatprep.subr.mxu0 0.0
    %1214 = vmatpush1.msra.mxu0 0.0
    %1215 = vmatprep.subr.mxu0 0.0
    %1216 = vmatpush1.msra.mxu0 0.0
    %1217 = vmatprep.subr.mxu0 0.0
    %1218 = vmatpush1.msra.mxu0 0.0
    %1219 = vmatprep.subr.mxu0 0.0
    %1220 = vmatpush1.msra.mxu0 0.0
    %1221 = vmatprep.subr.mxu0 0.0
    %1222 = vmatpush1.msra.mxu0 0.0
    %1223 = vmatprep.subr.mxu0 0.0
    %1224 = vmatpush1.msra.mxu0 0.0
    %1225 = vmatprep.subr.mxu0 0.0
    %1226 = vmatpush1.msra.mxu0 0.0
    %1227 = vmatprep.subr.mxu0 0.0
    %1228 = vmatpush1.msra.mxu0 0.0
    %1229 = vmatprep.subr.mxu0 0.0
    %1230 = vmatpush1.msra.mxu0 0.0
    %1231 = vmatprep.subr.mxu0 0.0
    %1232 = vmatpush1.msra.mxu0 0.0
    %1233 = vmatprep.subr.mxu0 0.0
    %1234 = vmatpush1.msra.mxu0 0.0
    %1235 = vmatprep.subr.mxu0 0.0
    %1236 = vmatpush1.msra.mxu0 0.0
    %1237 = vmatprep.subr.mxu0 0.0
    %1238 = vmatpush1.msra.mxu0 0.0
    %1239 = vmatprep.subr.mxu0 0.0
    %1240 = vmatpush1.msra.mxu0 0.0
    %1241 = vmatprep.subr.mxu0 0.0
    %1242 = vmatpush1.msra.mxu0 0.0
    %1243 = vmatprep.mubr.f32.mxu0 0.0
    %1244 = vmatmul.mubr.f32.gmra.mrb[0].mxu0 %v1177
    %v1245 = vpop.f32.mrb[0].mxu0
    %v1246 = vadd.f32 0.0, %v1245
    %v1247 = vpop.f32.mrb[0].mxu0
    %1248 = vdwg.mxu0
    %1249 = vrot.lane.b32.xlu0 %v167, 64
    %v1250 = vpop.permute.xlu0 %1249
    %v1253 = vsel %vm174, %v866, 0
    %1255 = vmatprep.subr.mxu0 0.0
    %1256 = vmatpush1.msra.mxu0 %v1250
    %1257 = vmatprep.subr.mxu0 0.0
    %1258 = vmatpush1.msra.mxu0 0.0
    %1259 = vmatprep.subr.mxu0 0.0
    %1260 = vmatpush1.msra.mxu0 0.0
    %1261 = vmatprep.subr.mxu0 0.0
    %1262 = vmatpush1.msra.mxu0 0.0
    %1263 = vmatprep.subr.mxu0 0.0
    %1264 = vmatpush1.msra.mxu0 0.0
    %1265 = vmatprep.subr.mxu0 0.0
    %1266 = vmatpush1.msra.mxu0 0.0
    %1267 = vmatprep.subr.mxu0 0.0
    %1268 = vmatpush1.msra.mxu0 0.0
    %1269 = vmatprep.subr.mxu0 0.0
    %1270 = vmatpush1.msra.mxu0 0.0
    %1271 = vmatprep.subr.mxu0 0.0
    %1272 = vmatpush1.msra.mxu0 0.0
    %1273 = vmatprep.subr.mxu0 0.0
    %1274 = vmatpush1.msra.mxu0 0.0
    %1275 = vmatprep.subr.mxu0 0.0
    %1276 = vmatpush1.msra.mxu0 0.0
    %1277 = vmatprep.subr.mxu0 0.0
    %1278 = vmatpush1.msra.mxu0 0.0
    %1279 = vmatprep.subr.mxu0 0.0
    %1280 = vmatpush1.msra.mxu0 0.0
    %1281 = vmatprep.subr.mxu0 0.0
    %1282 = vmatpush1.msra.mxu0 0.0
    %1283 = vmatprep.subr.mxu0 0.0
    %1284 = vmatpush1.msra.mxu0 0.0
    %1285 = vmatprep.subr.mxu0 0.0
    %1286 = vmatpush1.msra.mxu0 0.0
    %1287 = vmatprep.subr.mxu0 0.0
    %1288 = vmatpush1.msra.mxu0 0.0
    %1289 = vmatprep.subr.mxu0 0.0
    %1290 = vmatpush1.msra.mxu0 0.0
    %1291 = vmatprep.subr.mxu0 0.0
    %1292 = vmatpush1.msra.mxu0 0.0
    %1293 = vmatprep.subr.mxu0 0.0
    %1294 = vmatpush1.msra.mxu0 0.0
    %1295 = vmatprep.subr.mxu0 0.0
    %1296 = vmatpush1.msra.mxu0 0.0
    %1297 = vmatprep.subr.mxu0 0.0
    %1298 = vmatpush1.msra.mxu0 0.0
    %1299 = vmatprep.subr.mxu0 0.0
    %1300 = vmatpush1.msra.mxu0 0.0
    %1301 = vmatprep.subr.mxu0 0.0
    %1302 = vmatpush1.msra.mxu0 0.0
    %1303 = vmatprep.subr.mxu0 0.0
    %1304 = vmatpush1.msra.mxu0 0.0
    %1305 = vmatprep.subr.mxu0 0.0
    %1306 = vmatpush1.msra.mxu0 0.0
    %1307 = vmatprep.subr.mxu0 0.0
    %1308 = vmatpush1.msra.mxu0 0.0
    %1309 = vmatprep.subr.mxu0 0.0
    %1310 = vmatpush1.msra.mxu0 0.0
    %1311 = vmatprep.subr.mxu0 0.0
    %1312 = vmatpush1.msra.mxu0 0.0
    %1313 = vmatprep.subr.mxu0 0.0
    %1314 = vmatpush1.msra.mxu0 0.0
    %1315 = vmatprep.subr.mxu0 0.0
    %1316 = vmatpush1.msra.mxu0 0.0
    %1317 = vmatprep.subr.mxu0 0.0
    %1318 = vmatpush1.msra.mxu0 0.0
    %1319 = vmatprep.mubr.f32.mxu0 0.0
    %1320 = vmatmul.mubr.f32.gmra.mrb[0].mxu0 %v1253
    %v1321 = vpop.f32.mrb[0].mxu0
    %v1322 = vadd.f32 0.0, %v1321
    %v1323 = vpop.f32.mrb[0].mxu0
    %1324 = vdwg.mxu0
    %1325 = vrot.lane.b32.xlu0 %v169, 64
    %v1326 = vpop.permute.xlu0 %1325
    %v1329 = vsel %vm174, %v867, 0
    %1331 = vmatprep.subr.mxu0 0.0
    %1332 = vmatpush1.msra.mxu0 %v1326
    %1333 = vmatprep.subr.mxu0 0.0
    %1334 = vmatpush1.msra.mxu0 0.0
    %1335 = vmatprep.subr.mxu0 0.0
    %1336 = vmatpush1.msra.mxu0 0.0
    %1337 = vmatprep.subr.mxu0 0.0
    %1338 = vmatpush1.msra.mxu0 0.0
    %1339 = vmatprep.subr.mxu0 0.0
    %1340 = vmatpush1.msra.mxu0 0.0
    %1341 = vmatprep.subr.mxu0 0.0
    %1342 = vmatpush1.msra.mxu0 0.0
    %1343 = vmatprep.subr.mxu0 0.0
    %1344 = vmatpush1.msra.mxu0 0.0
    %1345 = vmatprep.subr.mxu0 0.0
    %1346 = vmatpush1.msra.mxu0 0.0
    %1347 = vmatprep.subr.mxu0 0.0
    %1348 = vmatpush1.msra.mxu0 0.0
    %1349 = vmatprep.subr.mxu0 0.0
    %1350 = vmatpush1.msra.mxu0 0.0
    %1351 = vmatprep.subr.mxu0 0.0
    %1352 = vmatpush1.msra.mxu0 0.0
    %1353 = vmatprep.subr.mxu0 0.0
    %1354 = vmatpush1.msra.mxu0 0.0
    %1355 = vmatprep.subr.mxu0 0.0
    %1356 = vmatpush1.msra.mxu0 0.0
    %1357 = vmatprep.subr.mxu0 0.0
    %1358 = vmatpush1.msra.mxu0 0.0
    %1359 = vmatprep.subr.mxu0 0.0
    %1360 = vmatpush1.msra.mxu0 0.0
    %1361 = vmatprep.subr.mxu0 0.0
    %1362 = vmatpush1.msra.mxu0 0.0
    %1363 = vmatprep.subr.mxu0 0.0
    %1364 = vmatpush1.msra.mxu0 0.0
    %1365 = vmatprep.subr.mxu0 0.0
    %1366 = vmatpush1.msra.mxu0 0.0
    %1367 = vmatprep.subr.mxu0 0.0
    %1368 = vmatpush1.msra.mxu0 0.0
    %1369 = vmatprep.subr.mxu0 0.0
    %1370 = vmatpush1.msra.mxu0 0.0
    %1371 = vmatprep.subr.mxu0 0.0
    %1372 = vmatpush1.msra.mxu0 0.0
    %1373 = vmatprep.subr.mxu0 0.0
    %1374 = vmatpush1.msra.mxu0 0.0
    %1375 = vmatprep.subr.mxu0 0.0
    %1376 = vmatpush1.msra.mxu0 0.0
    %1377 = vmatprep.subr.mxu0 0.0
    %1378 = vmatpush1.msra.mxu0 0.0
    %1379 = vmatprep.subr.mxu0 0.0
    %1380 = vmatpush1.msra.mxu0 0.0
    %1381 = vmatprep.subr.mxu0 0.0
    %1382 = vmatpush1.msra.mxu0 0.0
    %1383 = vmatprep.subr.mxu0 0.0
    %1384 = vmatpush1.msra.mxu0 0.0
    %1385 = vmatprep.subr.mxu0 0.0
    %1386 = vmatpush1.msra.mxu0 0.0
    %1387 = vmatprep.subr.mxu0 0.0
    %1388 = vmatpush1.msra.mxu0 0.0
    %1389 = vmatprep.subr.mxu0 0.0
    %1390 = vmatpush1.msra.mxu0 0.0
    %1391 = vmatprep.subr.mxu0 0.0
    %1392 = vmatpush1.msra.mxu0 0.0
    %1393 = vmatprep.subr.mxu0 0.0
    %1394 = vmatpush1.msra.mxu0 0.0
    %1395 = vmatprep.mubr.f32.mxu0 0.0
    %1396 = vmatmul.mubr.f32.gmra.mrb[0].mxu0 %v1329
    %v1397 = vpop.f32.mrb[0].mxu0
    %v1398 = vadd.f32 0.0, %v1397
    %v1399 = vpop.f32.mrb[0].mxu0
    %1400 = vdwg.mxu0
    %1401 = vrot.lane.b32.xlu0 %v171, 64
    %v1402 = vpop.permute.xlu0 %1401
    %v1405 = vsel %vm174, %v868, 0
    %1407 = vmatprep.subr.mxu0 0.0
    %1408 = vmatpush1.msra.mxu0 %v1402
    %1409 = vmatprep.subr.mxu0 0.0
    %1410 = vmatpush1.msra.mxu0 0.0
    %1411 = vmatprep.subr.mxu0 0.0
    %1412 = vmatpush1.msra.mxu0 0.0
    %1413 = vmatprep.subr.mxu0 0.0
    %1414 = vmatpush1.msra.mxu0 0.0
    %1415 = vmatprep.subr.mxu0 0.0
    %1416 = vmatpush1.msra.mxu0 0.0
    %1417 = vmatprep.subr.mxu0 0.0
    %1418 = vmatpush1.msra.mxu0 0.0
    %1419 = vmatprep.subr.mxu0 0.0
    %1420 = vmatpush1.msra.mxu0 0.0
    %1421 = vmatprep.subr.mxu0 0.0
    %1422 = vmatpush1.msra.mxu0 0.0
    %1423 = vmatprep.subr.mxu0 0.0
    %1424 = vmatpush1.msra.mxu0 0.0
    %1425 = vmatprep.subr.mxu0 0.0
    %1426 = vmatpush1.msra.mxu0 0.0
    %1427 = vmatprep.subr.mxu0 0.0
    %1428 = vmatpush1.msra.mxu0 0.0
    %1429 = vmatprep.subr.mxu0 0.0
    %1430 = vmatpush1.msra.mxu0 0.0
    %1431 = vmatprep.subr.mxu0 0.0
    %1432 = vmatpush1.msra.mxu0 0.0
    %1433 = vmatprep.subr.mxu0 0.0
    %1434 = vmatpush1.msra.mxu0 0.0
    %1435 = vmatprep.subr.mxu0 0.0
    %1436 = vmatpush1.msra.mxu0 0.0
    %1437 = vmatprep.subr.mxu0 0.0
    %1438 = vmatpush1.msra.mxu0 0.0
    %1439 = vmatprep.subr.mxu0 0.0
    %1440 = vmatpush1.msra.mxu0 0.0
    %1441 = vmatprep.subr.mxu0 0.0
    %1442 = vmatpush1.msra.mxu0 0.0
    %1443 = vmatprep.subr.mxu0 0.0
    %1444 = vmatpush1.msra.mxu0 0.0
    %1445 = vmatprep.subr.mxu0 0.0
    %1446 = vmatpush1.msra.mxu0 0.0
    %1447 = vmatprep.subr.mxu0 0.0
    %1448 = vmatpush1.msra.mxu0 0.0
    %1449 = vmatprep.subr.mxu0 0.0
    %1450 = vmatpush1.msra.mxu0 0.0
    %1451 = vmatprep.subr.mxu0 0.0
    %1452 = vmatpush1.msra.mxu0 0.0
    %1453 = vmatprep.subr.mxu0 0.0
    %1454 = vmatpush1.msra.mxu0 0.0
    %1455 = vmatprep.subr.mxu0 0.0
    %1456 = vmatpush1.msra.mxu0 0.0
    %1457 = vmatprep.subr.mxu0 0.0
    %1458 = vmatpush1.msra.mxu0 0.0
    %1459 = vmatprep.subr.mxu0 0.0
    %1460 = vmatpush1.msra.mxu0 0.0
    %1461 = vmatprep.subr.mxu0 0.0
    %1462 = vmatpush1.msra.mxu0 0.0
    %1463 = vmatprep.subr.mxu0 0.0
    %1464 = vmatpush1.msra.mxu0 0.0
    %1465 = vmatprep.subr.mxu0 0.0
    %1466 = vmatpush1.msra.mxu0 0.0
    %1467 = vmatprep.subr.mxu0 0.0
    %1468 = vmatpush1.msra.mxu0 0.0
    %1469 = vmatprep.subr.mxu0 0.0
    %1470 = vmatpush1.msra.mxu0 0.0
    %1471 = vmatprep.mubr.f32.mxu0 0.0
    %1472 = vmatmul.mubr.f32.gmra.mrb[0].mxu0 %v1405
    %v1473 = vpop.f32.mrb[0].mxu0
    %v1474 = vadd.f32 0.0, %v1473
    %v1475 = vpop.f32.mrb[0].mxu0
    %1476 = vdwg.mxu0
    %1479 = vrot.lane.b32.xlu0 %v1094, 8
    %v1480 = vpop.permute.xlu0 %1479
    %1481 = vrot.lane.b32.xlu0 %v1170, 8
    %v1482 = vpop.permute.xlu0 %1481
    %1487 = vrot.lane.b32.xlu0 %v1246, 16
    %v1488 = vpop.permute.xlu0 %1487
    %1489 = vrot.lane.b32.xlu0 %v1322, 16
    %v1490 = vpop.permute.xlu0 %1489
    %1495 = vrot.lane.b32.xlu0 %v1398, 24
    %v1496 = vpop.permute.xlu0 %1495
    %1497 = vrot.lane.b32.xlu0 %v1474, 24
    %v1498 = vpop.permute.xlu0 %1497
    %v1501 = vsel %vm174, %v942, %v1480
    %v1502 = vsel %vm174, %v1018, %v1482
    %vm1503 = vcmask 130048
    %v1504 = vsel %vm1503, %v1501, %v1488
    %v1505 = vsel %vm1503, %v1502, %v1490
    %vm1506 = vcmask 195584
    %v1507 = vsel %vm1506, %v1504, %v1496
    %v1508 = vsel %vm1506, %v1505, %v1498
    %v1509 = vld [vmem:[%s2] sm:$0xff]
    %v1510 = vld [vmem:[%s2 + $0x8] sm:$0xff]
    %v1511 = vld [vmem:[%s2 + $0x10] sm:$0xff]
    %v1512 = vld [vmem:[%s2 + $0x18] sm:$0xff]
    %v1514 = vsel %vm41, %v1507, 0
    %v1517 = vsel %vm41, %v1508, 0
    %1519 = vmatprep.subr.mxu0 0.0
    %1520 = vmatpush1.msra.mxu0 %v1509
    %1521 = vmatprep.subr.mxu0 0.0
    %1522 = vmatpush1.msra.mxu0 %v1510
    %1523 = vmatprep.subr.mxu0 0.0
    %1524 = vmatpush1.msra.mxu0 %v1511
    %1525 = vmatprep.subr.mxu0 0.0
    %1526 = vmatpush1.msra.mxu0 %v1512
    %1527 = vmatprep.subr.mxu0 0.0
    %1528 = vmatpush1.msra.mxu0 0.0
    %1529 = vmatprep.subr.mxu0 0.0
    %1530 = vmatpush1.msra.mxu0 0.0
    %1531 = vmatprep.subr.mxu0 0.0
    %1532 = vmatpush1.msra.mxu0 0.0
    %1533 = vmatprep.subr.mxu0 0.0
    %1534 = vmatpush1.msra.mxu0 0.0
    %1535 = vmatprep.subr.mxu0 0.0
    %1536 = vmatpush1.msra.mxu0 0.0
    %1537 = vmatprep.subr.mxu0 0.0
    %1538 = vmatpush1.msra.mxu0 0.0
    %1539 = vmatprep.subr.mxu0 0.0
    %1540 = vmatpush1.msra.mxu0 0.0
    %1541 = vmatprep.subr.mxu0 0.0
    %1542 = vmatpush1.msra.mxu0 0.0
    %1543 = vmatprep.subr.mxu0 0.0
    %1544 = vmatpush1.msra.mxu0 0.0
    %1545 = vmatprep.subr.mxu0 0.0
    %1546 = vmatpush1.msra.mxu0 0.0
    %1547 = vmatprep.subr.mxu0 0.0
    %1548 = vmatpush1.msra.mxu0 0.0
    %1549 = vmatprep.subr.mxu0 0.0
    %1550 = vmatpush1.msra.mxu0 0.0
    %1551 = vmatprep.subr.mxu0 0.0
    %1552 = vmatpush1.msra.mxu0 0.0
    %1553 = vmatprep.subr.mxu0 0.0
    %1554 = vmatpush1.msra.mxu0 0.0
    %1555 = vmatprep.subr.mxu0 0.0
    %1556 = vmatpush1.msra.mxu0 0.0
    %1557 = vmatprep.subr.mxu0 0.0
    %1558 = vmatpush1.msra.mxu0 0.0
    %1559 = vmatprep.subr.mxu0 0.0
    %1560 = vmatpush1.msra.mxu0 0.0
    %1561 = vmatprep.subr.mxu0 0.0
    %1562 = vmatpush1.msra.mxu0 0.0
    %1563 = vmatprep.subr.mxu0 0.0
    %1564 = vmatpush1.msra.mxu0 0.0
    %1565 = vmatprep.subr.mxu0 0.0
    %1566 = vmatpush1.msra.mxu0 0.0
    %1567 = vmatprep.subr.mxu0 0.0
    %1568 = vmatpush1.msra.mxu0 0.0
    %1569 = vmatprep.subr.mxu0 0.0
    %1570 = vmatpush1.msra.mxu0 0.0
    %1571 = vmatprep.subr.mxu0 0.0
    %1572 = vmatpush1.msra.mxu0 0.0
    %1573 = vmatprep.subr.mxu0 0.0
    %1574 = vmatpush1.msra.mxu0 0.0
    %1575 = vmatprep.subr.mxu0 0.0
    %1576 = vmatpush1.msra.mxu0 0.0
    %1577 = vmatprep.subr.mxu0 0.0
    %1578 = vmatpush1.msra.mxu0 0.0
    %1579 = vmatprep.subr.mxu0 0.0
    %1580 = vmatpush1.msra.mxu0 0.0
    %1581 = vmatprep.subr.mxu0 0.0
    %1582 = vmatpush1.msra.mxu0 0.0
    %1583 = vmatprep.mubr.f32.mxu0 0.0
    %1584 = vmatmul.mubr.f32.gmra.mrb[0].mxu0 %v1514
    %v1585 = vpop.f32.mrb[0].mxu0
    %v1586 = vadd.f32 0.0, %v1585
    %v1587 = vpop.f32.mrb[0].mxu0
    %1588 = vmatprep.mubr.f32.mxu0 0.0
    %1589 = vmatmul.mubr.f32.gmra.mrb[0].mxu0 %v1517
    %v1590 = vpop.f32.mrb[0].mxu0
    %v1591 = vadd.f32 0.0, %v1590
    %v1592 = vpop.f32.mrb[0].mxu0
    %1593 = vdwg.mxu0
    %v1594 = vadd.f32 %v38, %v1586
    %v1595 = vadd.f32 %v39, %v1591
    %v1596 = vlaneseq
    %v1597 = vshrl.u32 %v1596, 7
    %v1598 = vsub.s32 1, %v1597
    %v1599 = vrot.slane %v40, %v1598
    %v1600 = vadd.f32 %v1594, %v1599
    %v1601 = vadd.f32 %v1595, %v1599
    %v1602 = vsel %vm41, %v1600, 0.0
    %1603 = vadd.xlane.f32.xlu0 %v1602
    %v1604 = vpop.xlane.xlu0 %1603
    %v1605 = vsel %vm41, %v1601, 0.0
    %1606 = vadd.xlane.f32.xlu0 %v1605
    %v1607 = vpop.xlane.xlu0 %1606
    %v1608 = vmul.f32 %v1604, %v48
    %v1609 = vmul.f32 %v1607, %v48
    %v1610 = vsub.f32 %v1600, %v1608
    %v1611 = vsub.f32 %v1601, %v1609
    %v1612 = vmul.f32 %v1610, %v1610
    %v1613 = vmul.f32 %v1611, %v1611
    %v1614 = vsel %vm41, %v1612, 0.0
    %1615 = vadd.xlane.f32.xlu0 %v1614
    %v1616 = vpop.xlane.xlu0 %1615
    %v1617 = vsel %vm41, %v1613, 0.0
    %1618 = vadd.xlane.f32.xlu0 %v1617
    %v1619 = vpop.xlane.xlu0 %1618
    %v1620 = vmul.f32 %v1616, %v48
    %v1621 = vmul.f32 %v1619, %v48
    %v1622 = vadd.f32 %v1620, 1e-06
    %v1623 = vadd.f32 %v1621, 1e-06
    %v1624 = vrsqrt.pop %v1622
    %v1625 = vrsqrt.pop %v1623
    %v1626 = vmul.f32 %v1610, %v1624
    %v1627 = vmul.f32 %v1611, %v1625
    %v1628 = vld [vmem:[%s3] sm:$0xff]
    %v1629 = vld [vmem:[%s3 + $0x8] sm:$0xff]
    %v1630 = vld [vmem:[%s3 + $0x10] sm:$0xff]
    %v1631 = vld [vmem:[%s3 + $0x18] sm:$0xff]
    %v1632 = vlaneseq
    %v1633 = vshrl.u32 %v1632, 7
    %v1634 = vsub.s32 2, %v1633
    %v1635 = vrot.slane %v40, %v1634
    %v1637 = vsel %vm41, %v1626, 0
    %v1640 = vsel %vm41, %v1627, 0
    %1642 = vmatprep.subr.mxu0 0.0
    %1643 = vmatpush1.msra.mxu0 %v1628
    %1644 = vmatprep.subr.mxu0 0.0
    %1645 = vmatpush1.msra.mxu0 %v1629
    %1646 = vmatprep.subr.mxu0 0.0
    %1647 = vmatpush1.msra.mxu0 %v1630
    %1648 = vmatprep.subr.mxu0 0.0
    %1649 = vmatpush1.msra.mxu0 %v1631
    %1650 = vmatprep.subr.mxu0 0.0
    %1651 = vmatpush1.msra.mxu0 0.0
    %1652 = vmatprep.subr.mxu0 0.0
    %1653 = vmatpush1.msra.mxu0 0.0
    %1654 = vmatprep.subr.mxu0 0.0
    %1655 = vmatpush1.msra.mxu0 0.0
    %1656 = vmatprep.subr.mxu0 0.0
    %1657 = vmatpush1.msra.mxu0 0.0
    %1658 = vmatprep.subr.mxu0 0.0
    %1659 = vmatpush1.msra.mxu0 0.0
    %1660 = vmatprep.subr.mxu0 0.0
    %1661 = vmatpush1.msra.mxu0 0.0
    %1662 = vmatprep.subr.mxu0 0.0
    %1663 = vmatpush1.msra.mxu0 0.0
    %1664 = vmatprep.subr.mxu0 0.0
    %1665 = vmatpush1.msra.mxu0 0.0
    %1666 = vmatprep.subr.mxu0 0.0
    %1667 = vmatpush1.msra.mxu0 0.0
    %1668 = vmatprep.subr.mxu0 0.0
    %1669 = vmatpush1.msra.mxu0 0.0
    %1670 = vmatprep.subr.mxu0 0.0
    %1671 = vmatpush1.msra.mxu0 0.0
    %1672 = vmatprep.subr.mxu0 0.0
    %1673 = vmatpush1.msra.mxu0 0.0
    %1674 = vmatprep.subr.mxu0 0.0
    %1675 = vmatpush1.msra.mxu0 0.0
    %1676 = vmatprep.subr.mxu0 0.0
    %1677 = vmatpush1.msra.mxu0 0.0
    %1678 = vmatprep.subr.mxu0 0.0
    %1679 = vmatpush1.msra.mxu0 0.0
    %1680 = vmatprep.subr.mxu0 0.0
    %1681 = vmatpush1.msra.mxu0 0.0
    %1682 = vmatprep.subr.mxu0 0.0
    %1683 = vmatpush1.msra.mxu0 0.0
    %1684 = vmatprep.subr.mxu0 0.0
    %1685 = vmatpush1.msra.mxu0 0.0
    %1686 = vmatprep.subr.mxu0 0.0
    %1687 = vmatpush1.msra.mxu0 0.0
    %1688 = vmatprep.subr.mxu0 0.0
    %1689 = vmatpush1.msra.mxu0 0.0
    %1690 = vmatprep.subr.mxu0 0.0
    %1691 = vmatpush1.msra.mxu0 0.0
    %1692 = vmatprep.subr.mxu0 0.0
    %1693 = vmatpush1.msra.mxu0 0.0
    %1694 = vmatprep.subr.mxu0 0.0
    %1695 = vmatpush1.msra.mxu0 0.0
    %1696 = vmatprep.subr.mxu0 0.0
    %1697 = vmatpush1.msra.mxu0 0.0
    %1698 = vmatprep.subr.mxu0 0.0
    %1699 = vmatpush1.msra.mxu0 0.0
    %1700 = vmatprep.subr.mxu0 0.0
    %1701 = vmatpush1.msra.mxu0 0.0
    %1702 = vmatprep.subr.mxu0 0.0
    %1703 = vmatpush1.msra.mxu0 0.0
    %1704 = vmatprep.subr.mxu0 0.0
    %1705 = vmatpush1.msra.mxu0 0.0
    %1706 = vmatprep.mubr.f32.mxu0 0.0
    %1707 = vmatmul.mubr.f32.gmra.mrb[0].mxu0 %v1637
    %v1708 = vpop.f32.mrb[0].mxu0
    %v1709 = vadd.f32 %v1635, %v1708
    %v1710 = vpop.f32.mrb[0].mxu0
    %1711 = vmatprep.mubr.f32.mxu0 0.0
    %1712 = vmatmul.mubr.f32.gmra.mrb[0].mxu0 %v1640
    %v1713 = vpop.f32.mrb[0].mxu0
    %v1714 = vadd.f32 %v1635, %v1713
    %v1715 = vpop.f32.mrb[0].mxu0
    %1716 = vdwg.mxu0
    %v1717 = vmax.f32 %v1709, 0.0
    %v1718 = vmax.f32 %v1714, 0.0
    %v1719 = vld [vmem:[%s4] sm:$0xff]
    %v1720 = vld [vmem:[%s4 + $0x8] sm:$0xff]
    %v1721 = vld [vmem:[%s4 + $0x10] sm:$0xff]
    %v1722 = vld [vmem:[%s4 + $0x18] sm:$0xff]
    %v1723 = vld [vmem:[%s4 + $0x20] sm:$0xff]
    %v1724 = vld [vmem:[%s4 + $0x28] sm:$0xff]
    %v1725 = vld [vmem:[%s4 + $0x30] sm:$0xff]
    %v1726 = vld [vmem:[%s4 + $0x38] sm:$0xff]
    %vm1727 = vcmask 523264
    %v1729 = vsel %vm1727, %v1717, 0
    %v1732 = vsel %vm1727, %v1718, 0
    %1734 = vmatprep.subr.mxu0 0.0
    %1735 = vmatpush1.msra.mxu0 %v1719
    %1736 = vmatprep.subr.mxu0 0.0
    %1737 = vmatpush1.msra.mxu0 %v1720
    %1738 = vmatprep.subr.mxu0 0.0
    %1739 = vmatpush1.msra.mxu0 %v1721
    %1740 = vmatprep.subr.mxu0 0.0
    %1741 = vmatpush1.msra.mxu0 %v1722
    %1742 = vmatprep.subr.mxu0 0.0
    %1743 = vmatpush1.msra.mxu0 %v1723
    %1744 = vmatprep.subr.mxu0 0.0
    %1745 = vmatpush1.msra.mxu0 %v1724
    %1746 = vmatprep.subr.mxu0 0.0
    %1747 = vmatpush1.msra.mxu0 %v1725
    %1748 = vmatprep.subr.mxu0 0.0
    %1749 = vmatpush1.msra.mxu0 %v1726
    %1750 = vmatprep.subr.mxu0 0.0
    %1751 = vmatpush1.msra.mxu0 0.0
    %1752 = vmatprep.subr.mxu0 0.0
    %1753 = vmatpush1.msra.mxu0 0.0
    %1754 = vmatprep.subr.mxu0 0.0
    %1755 = vmatpush1.msra.mxu0 0.0
    %1756 = vmatprep.subr.mxu0 0.0
    %1757 = vmatpush1.msra.mxu0 0.0
    %1758 = vmatprep.subr.mxu0 0.0
    %1759 = vmatpush1.msra.mxu0 0.0
    %1760 = vmatprep.subr.mxu0 0.0
    %1761 = vmatpush1.msra.mxu0 0.0
    %1762 = vmatprep.subr.mxu0 0.0
    %1763 = vmatpush1.msra.mxu0 0.0
    %1764 = vmatprep.subr.mxu0 0.0
    %1765 = vmatpush1.msra.mxu0 0.0
    %1766 = vmatprep.subr.mxu0 0.0
    %1767 = vmatpush1.msra.mxu0 0.0
    %1768 = vmatprep.subr.mxu0 0.0
    %1769 = vmatpush1.msra.mxu0 0.0
    %1770 = vmatprep.subr.mxu0 0.0
    %1771 = vmatpush1.msra.mxu0 0.0
    %1772 = vmatprep.subr.mxu0 0.0
    %1773 = vmatpush1.msra.mxu0 0.0
    %1774 = vmatprep.subr.mxu0 0.0
    %1775 = vmatpush1.msra.mxu0 0.0
    %1776 = vmatprep.subr.mxu0 0.0
    %1777 = vmatpush1.msra.mxu0 0.0
    %1778 = vmatprep.subr.mxu0 0.0
    %1779 = vmatpush1.msra.mxu0 0.0
    %1780 = vmatprep.subr.mxu0 0.0
    %1781 = vmatpush1.msra.mxu0 0.0
    %1782 = vmatprep.subr.mxu0 0.0
    %1783 = vmatpush1.msra.mxu0 0.0
    %1784 = vmatprep.subr.mxu0 0.0
    %1785 = vmatpush1.msra.mxu0 0.0
    %1786 = vmatprep.subr.mxu0 0.0
    %1787 = vmatpush1.msra.mxu0 0.0
    %1788 = vmatprep.subr.mxu0 0.0
    %1789 = vmatpush1.msra.mxu0 0.0
    %1790 = vmatprep.subr.mxu0 0.0
    %1791 = vmatpush1.msra.mxu0 0.0
    %1792 = vmatprep.subr.mxu0 0.0
    %1793 = vmatpush1.msra.mxu0 0.0
    %1794 = vmatprep.subr.mxu0 0.0
    %1795 = vmatpush1.msra.mxu0 0.0
    %1796 = vmatprep.subr.mxu0 0.0
    %1797 = vmatpush1.msra.mxu0 0.0
    %1798 = vmatprep.mubr.f32.mxu0 0.0
    %1799 = vmatmul.mubr.f32.gmra.mrb[0].mxu0 %v1729
    %v1800 = vpop.f32.mrb[0].mxu0
    %v1801 = vadd.f32 0.0, %v1800
    %v1802 = vpop.f32.mrb[0].mxu0
    %1803 = vmatprep.mubr.f32.mxu0 0.0
    %1804 = vmatmul.mubr.f32.gmra.mrb[0].mxu0 %v1732
    %v1805 = vpop.f32.mrb[0].mxu0
    %v1806 = vadd.f32 0.0, %v1805
    %v1807 = vpop.f32.mrb[0].mxu0
    %1808 = vdwg.mxu0
    %v1809 = vadd.f32 %v1600, %v1801
    %v1810 = vadd.f32 %v1601, %v1806
    %v1811 = vlaneseq
    %v1812 = vshrl.u32 %v1811, 7
    %v1813 = vsub.s32 3, %v1812
    %v1814 = vrot.slane %v40, %v1813
    %v1815 = vadd.f32 %v1809, %v1814
    %v1816 = vadd.f32 %v1810, %v1814
    %1817 = vst.msk [vmem:[#allocation5] sm:$0xff] %vm41, %v1815
    %1818 = vst.msk [vmem:[#allocation5 + $0x8] sm:$0xff] %vm41, %v1816
    // Predicated region
    $region30: #{tpu_custom_call.1} parent=1 // pred_check
      _
    $region31: #{tpu_custom_call.1} parent=1 // pred_check_branch
      %1820 = sbr.rel (0) target = $region33
    $region32: #{tpu_custom_call.1} parent=1 // pred_region
      %s1822 = ssub.s32 256, 256
      %1823 = vsyncadd [#allocation4], %s1822
      %s1824 = sshll.u32 [#allocation5], 4
      %s1825 = int_to_ptr.vmem [resolvable:$true] %s1824
      %1830 = dma.vmem_to_hbm [thread:$0]  %s1825, 256, %s6, [#allocation4], 128, 128, 8
    $region33: #{tpu_custom_call.1} parent=1 // pred_fallthru
      _
    // Predicated region
    $region34: #{tpu_custom_call.1} parent=1 // pred_check
      _
    $region35: #{tpu_custom_call.1} parent=1 // pred_check_branch
      %1832 = sbr.rel (0) target = $region37
    $region36: #{tpu_custom_call.1} parent=1 // pred_region
      %1833 = dma.done [#allocation4], 256
    $region37: #{tpu_custom_call.1} parent=1 // pred_fallthru
      _
    %1834 = vsyncpa [#allocation3], 1
    %1835 = vsyncpa [#allocation4], 1

</llo_original>
